<compile_context>
chip_gen: v6e
topology: v6e:2x2x1
jax: 0.10.0
libtpu: 0.0.40
codegen_flags: <defaults>
</compile_context>

<pallas_src>
import functools

import jax
import jax.numpy as jnp
from jax.experimental import pallas as pl
from jax.experimental.pallas import tpu as pltpu

INPUT_SIZE = 784
HIDDEN_SIZE = 500
NUM_CLASSES = 10

HIDDEN_PAD = 512   # 500 -> 512 (multiple of 128): lane-dense h, aligned K for fc2
OUT_PAD = 128      # 10  -> 128: lane-dense output block, unmasked stores


def _round_up(x, m):
    return (x + m - 1) // m * m


def mlp_kernel(x_ref, w1_ref, b1_ref, w2_ref, b2_ref, o_ref):
    # fc1 on MXU: bf16 x bf16 inputs, f32 accumulation.
    h = jnp.dot(x_ref[...], w1_ref[...], preferred_element_type=jnp.float32)
    # Bias + ReLU in f32 (in place on the accumulator, no extra temporaries).
    h = jnp.maximum(h + b1_ref[...], 0.0)
    # fc2: cast h to bf16 only when feeding the MXU; accumulate in f32.
    out = jnp.dot(h.astype(jnp.bfloat16), w2_ref[...],
                  preferred_element_type=jnp.float32)
    o_ref[...] = (out + b2_ref[...]).astype(o_ref.dtype)


def prepare_params(w1, b1, w2, b2):
    """One-time prep: zero-pad hidden->512 / classes->128, cast weights to bf16.

    Padded hidden columns get bias 0 -> relu(0) = 0, and padded rows/cols of w2
    are 0, so the padded math is exactly the unpadded math on [:, :10].
    Biases stay f32 (elementwise path stays f32 inside the kernel).
    """
    w1p = jnp.pad(w1, ((0, 0), (0, HIDDEN_PAD - HIDDEN_SIZE))).astype(jnp.bfloat16)
    b1p = jnp.pad(b1, ((0, 0), (0, HIDDEN_PAD - HIDDEN_SIZE))).astype(jnp.float32)
    w2p = jnp.pad(w2, ((0, HIDDEN_PAD - HIDDEN_SIZE),
                       (0, OUT_PAD - NUM_CLASSES))).astype(jnp.bfloat16)
    b2p = jnp.pad(b2, ((0, 0), (0, OUT_PAD - NUM_CLASSES))).astype(jnp.float32)
    return w1p, b1p, w2p, b2p


@functools.partial(jax.jit, static_argnames=("tb",))
def neural_net_forward(x, params, *, tb=512):
    """Forward pass: x (B, 784) f32 -> logits (B, 10) f32."""
    w1p, b1p, w2p, b2p = params
    B = x.shape[0]

    # Batch tile: multiple of 8 (sublane), capped at tb; pad B to a multiple.
    tb = min(tb, _round_up(max(B, 1), 8))
    Bp = _round_up(B, tb)

    xp = x.astype(jnp.bfloat16)           # halve x HBM traffic (cast once here)
    if Bp != B:
        xp = jnp.pad(xp, ((0, Bp - B), (0, 0)))

    grid = (Bp // tb,)

    flops = 2 * Bp * (INPUT_SIZE * HIDDEN_PAD + HIDDEN_PAD * OUT_PAD)
    bytes_accessed = (xp.size * 2 + w1p.size * 2 + w2p.size * 2
                      + b1p.size * 4 + b2p.size * 4 + Bp * OUT_PAD * 4)

    out_padded = pl.pallas_call(
        mlp_kernel,
        out_shape=jax.ShapeDtypeStruct((Bp, OUT_PAD), jnp.float32),
        grid=grid,
        in_specs=[
            pl.BlockSpec((tb, INPUT_SIZE), lambda i: (i, 0)),       # x tile
            pl.BlockSpec((INPUT_SIZE, HIDDEN_PAD), lambda i: (0, 0)),  # w1 (resident)
            pl.BlockSpec((1, HIDDEN_PAD), lambda i: (0, 0)),        # b1 (resident)
            pl.BlockSpec((HIDDEN_PAD, OUT_PAD), lambda i: (0, 0)),  # w2 (resident)
            pl.BlockSpec((1, OUT_PAD), lambda i: (0, 0)),           # b2 (resident)
        ],
        out_specs=pl.BlockSpec((tb, OUT_PAD), lambda i: (i, 0)),
        compiler_params=pltpu.CompilerParams(
            dimension_semantics=("parallel",),   # megacore-shard batch (v7x)
        ),
        cost_estimate=pl.CostEstimate(
            flops=flops, transcendentals=0, bytes_accessed=bytes_accessed),
    )(xp, w1p, b1p, w2p, b2p)

    return out_padded[:B, :NUM_CLASSES]


def init_params(key):
    """Deterministic init mirroring nn.Linear shapes (stored transposed)."""
    k1, k2, k3, k4 = jax.random.split(key, 4)
    bound1 = 1.0 / (INPUT_SIZE ** 0.5)
    bound2 = 1.0 / (HIDDEN_SIZE ** 0.5)
    w1 = jax.random.uniform(k1, (INPUT_SIZE, HIDDEN_SIZE), jnp.float32,
                            minval=-bound1, maxval=bound1)
    b1 = jax.random.uniform(k2, (1, HIDDEN_SIZE), jnp.float32,
                            minval=-bound1, maxval=bound1)
    w2 = jax.random.uniform(k3, (HIDDEN_SIZE, NUM_CLASSES), jnp.float32,
                            minval=-bound2, maxval=bound2)
    b2 = jax.random.uniform(k4, (1, NUM_CLASSES), jnp.float32,
                            minval=-bound2, maxval=bound2)
    return w1, b1, w2, b2


if __name__ == "__main__":
    key = jax.random.PRNGKey(0)
    kx, kp = jax.random.split(key)

    B = 16  # small batch; tb=8 below exercises a 2-step batch grid
    x = jax.random.normal(kx, (B, INPUT_SIZE), jnp.float32)
    w1, b1, w2, b2 = init_params(kp)
    params = prepare_params(w1, b1, w2, b2)

    out = neural_net_forward(x, params, tb=8)
    out = jax.block_until_ready(out)
    assert out.shape == (B, NUM_CLASSES)

    # Reference 1: identical math in plain JAX (bf16 inputs, f32 accumulation).
    xb = x.astype(jnp.bfloat16).astype(jnp.float32)
    w1b = params[0].astype(jnp.float32)[:, :HIDDEN_SIZE]
    w2b = params[2].astype(jnp.float32)[:HIDDEN_SIZE, :NUM_CLASSES]
    h_ref = jnp.maximum(xb @ w1b + b1, 0.0)
    ref_bf16 = h_ref.astype(jnp.bfloat16).astype(jnp.float32) @ w2b + b2
    assert jnp.allclose(out, ref_bf16, atol=2e-3, rtol=2e-3)

    # Reference 2: full-f32 PyTorch-module math (looser tol due to bf16 inputs).
    ref_f32 = jnp.maximum(x @ w1 + b1, 0.0) @ w2 + b2
    assert jnp.allclose(out, ref_f32, atol=5e-2, rtol=5e-2)

    print("KERNEL_OK")
</pallas_src>

<mosaic_0001>
module attributes {stable_mosaic.version = 11 : i64} {
  func.func @mlp_kernel(%arg0: i32, %arg1: memref<8x784xbf16, #tpu.memory_space<vmem>>, %arg2: memref<784x512xbf16, #tpu.memory_space<vmem>>, %arg3: memref<1x512xf32, #tpu.memory_space<vmem>>, %arg4: memref<512x128xbf16, #tpu.memory_space<vmem>>, %arg5: memref<1x128xf32, #tpu.memory_space<vmem>>, %arg6: memref<8x128xf32, #tpu.memory_space<vmem>>) attributes {dimension_semantics = [#tpu.dimension_semantics<parallel>], iteration_bounds = array<i64: 2>, scalar_prefetch = 0 : i64, scratch_operands = 0 : i64, tpu.core_type = #tpu.core_type<tc>, window_params = [{transform_indices = @transform_0, window_bounds = array<i64: 8, 784>}, {pipeline_mode = #tpu.pipeline_mode<synchronous>, transform_indices = @transform_1, window_bounds = array<i64: 784, 512>}, {pipeline_mode = #tpu.pipeline_mode<synchronous>, transform_indices = @transform_2, window_bounds = array<i64: 1, 512>}, {pipeline_mode = #tpu.pipeline_mode<synchronous>, transform_indices = @transform_3, window_bounds = array<i64: 512, 128>}, {pipeline_mode = #tpu.pipeline_mode<synchronous>, transform_indices = @transform_4, window_bounds = array<i64: 1, 128>}, {transform_indices = @transform_5, window_bounds = array<i64: 8, 128>}]} {
    %c0 = arith.constant 0 : index
    %c0_0 = arith.constant 0 : index
    %0 = vector.load %arg1[%c0, %c0_0] : memref<8x784xbf16, #tpu.memory_space<vmem>>, vector<8x784xbf16>
    %c0_1 = arith.constant 0 : index
    %c0_2 = arith.constant 0 : index
    %1 = vector.load %arg2[%c0_1, %c0_2] : memref<784x512xbf16, #tpu.memory_space<vmem>>, vector<784x512xbf16>
    %cst = arith.constant dense<0.000000e+00> : vector<8x512xf32>
    %2 = tpu.matmul %0, %1, %cst {dimension_numbers = #tpu.dot_dimension_numbers<[1], [0], [0], [1], [0, 0, 1, 1], [], []>} : vector<8x784xbf16>, vector<784x512xbf16>, vector<8x512xf32> -> vector<8x512xf32>
    %c0_3 = arith.constant 0 : index
    %c0_4 = arith.constant 0 : index
    %3 = vector.load %arg3[%c0_3, %c0_4] : memref<1x512xf32, #tpu.memory_space<vmem>>, vector<1x512xf32>
    %4 = vector.broadcast %3 : vector<1x512xf32> to vector<8x512xf32>
    %5 = arith.addf %2, %4 : vector<8x512xf32>
    %cst_5 = arith.constant 0.000000e+00 : f32
    %6 = vector.broadcast %cst_5 : f32 to vector<8x512xf32>
    %7 = arith.maximumf %5, %6 : vector<8x512xf32>
    %8 = arith.truncf %7 : vector<8x512xf32> to vector<8x512xbf16>
    %c0_6 = arith.constant 0 : index
    %c0_7 = arith.constant 0 : index
    %9 = vector.load %arg4[%c0_6, %c0_7] : memref<512x128xbf16, #tpu.memory_space<vmem>>, vector<512x128xbf16>
    %cst_8 = arith.constant dense<0.000000e+00> : vector<8x128xf32>
    %10 = tpu.matmul %8, %9, %cst_8 {dimension_numbers = #tpu.dot_dimension_numbers<[1], [0], [0], [1], [0, 0, 1, 1], [], []>} : vector<8x512xbf16>, vector<512x128xbf16>, vector<8x128xf32> -> vector<8x128xf32>
    %c0_9 = arith.constant 0 : index
    %c0_10 = arith.constant 0 : index
    %11 = vector.load %arg5[%c0_9, %c0_10] : memref<1x128xf32, #tpu.memory_space<vmem>>, vector<1x128xf32>
    %12 = vector.broadcast %11 : vector<1x128xf32> to vector<8x128xf32>
    %13 = arith.addf %10, %12 : vector<8x128xf32>
    %c0_11 = arith.constant 0 : index
    %c0_12 = arith.constant 0 : index
    %14 = vector.load %arg6[%c0_11, %c0_12] : memref<8x128xf32, #tpu.memory_space<vmem>>, vector<8x128xf32>
    tpu.vector_store %arg6[%c0_11, %c0_12], %13 {strides = array<i32>} : memref<8x128xf32, #tpu.memory_space<vmem>>, vector<8x128xf32>,
    return
  }
  func.func @transform_0(%arg0: i32) -> (i32, i32) {
    %c0_i32 = arith.constant 0 : i32
    %c0_i32_0 = arith.constant 0 : i32
    return %arg0, %c0_i32 : i32, i32
  }
  func.func @transform_1(%arg0: i32) -> (i32, i32) {
    %c0_i32 = arith.constant 0 : i32
    %c0_i32_0 = arith.constant 0 : i32
    %c0_i32_1 = arith.constant 0 : i32
    return %c0_i32, %c0_i32_0 : i32, i32
  }
  func.func @transform_2(%arg0: i32) -> (i32, i32) {
    %c0_i32 = arith.constant 0 : i32
    %c0_i32_0 = arith.constant 0 : i32
    %c0_i32_1 = arith.constant 0 : i32
    return %c0_i32, %c0_i32_0 : i32, i32
  }
  func.func @transform_3(%arg0: i32) -> (i32, i32) {
    %c0_i32 = arith.constant 0 : i32
    %c0_i32_0 = arith.constant 0 : i32
    %c0_i32_1 = arith.constant 0 : i32
    return %c0_i32, %c0_i32_0 : i32, i32
  }
  func.func @transform_4(%arg0: i32) -> (i32, i32) {
    %c0_i32 = arith.constant 0 : i32
    %c0_i32_0 = arith.constant 0 : i32
    %c0_i32_1 = arith.constant 0 : i32
    return %c0_i32, %c0_i32_0 : i32, i32
  }
  func.func @transform_5(%arg0: i32) -> (i32, i32) {
    %c0_i32 = arith.constant 0 : i32
    %c0_i32_0 = arith.constant 0 : i32
    return %arg0, %c0_i32 : i32, i32
  }
}

</mosaic_0001>

<llo_original>
// kernel: neural_net_forward.1
$region0: #{neural_net_forward.1}
  #allocation0 [shape = 'u32[]', space=smem, size = 0x4, offset = 0x4, fixed_abs, tag = 'smem constant byte address 0x4 - core index']
  #allocation1 [shape = 'u32[144,128]{1,0:T(1,128)}', space=vmem, size = 0x12000, scoped, tag = 'internal scratch']
  %s0 = inlined_call_operand.vmem [shape: bf16[16,784], index: 0, kind: input, shape index: {}]
  %s1 = inlined_call_operand.hbm [shape: bf16[784,512], index: 1, kind: input, shape index: {}]
  %s2 = inlined_call_operand.vmem [shape: f32[1,512], index: 2, kind: input, shape index: {}]
  %s3 = inlined_call_operand.hbm [shape: bf16[512,128], index: 3, kind: input, shape index: {}]
  %s4 = inlined_call_operand.vmem [shape: f32[1,128], index: 4, kind: input, shape index: {}]
  %s5 = inlined_call_operand.hbm [shape: f32[16,128], index: 5, kind: output, shape index: {}]
  %s6 = sld [smem:[#allocation0]]
  $region61: #{neural_net_forward.1} parent=0
    _
  %s8 = ssub.s32 1, %s6
  %s9 = scalar_select 0, %s8, %s6
  $region1: #{neural_net_forward.1} parent=0
    #allocation2 [shape = 'u8[802816]{0}', space=vmem, size = 0xc4000, scoped, tag = 'input window, operand 1, single buffered']
    #allocation3 [shape = 's32[2]{0}', space=sflag, size = 0x8, scoped, tag = 'scoped memory for neural_net_forward.1']
    #allocation4 [shape = 's32[2]{0}', space=sflag, size = 0x8, scoped, tag = 'scoped memory for neural_net_forward.1']
    #allocation5 [shape = 'u8[131072]{0}', space=vmem, size = 0x20000, scoped, tag = 'input window, operand 3, single buffered']
    #allocation6 [shape = 's32[1]{0}', space=sflag, size = 0x4, scoped, tag = 'scoped memory for neural_net_forward.1']
    #allocation7 [shape = 'u8[8192]{0}', space=vmem, size = 0x2000, scoped, tag = 'output window, operand 0']
    %10 = vsyncpa [#allocation3], 0
    %11 = vsyncpa [#allocation6], 0
    %12 = vsyncpa [#allocation4], 0
    %s13 = scalar_lea.sflag [#allocation4], 1
    %14 = vsyncpa %s13, 0
    loop: start=0, step=1, limit=4
    $region2: #{neural_net_forward.1} parent=1 // loop_pre_header
      _
    $region3: #{neural_net_forward.1} parent=1 // loop_header
      %s16 = sphi 0, %s20
      %p17 = scmp.ge.s32.totalorder %s16, 4
      %s26 = sphi 0, %s28
      %s29 = sphi 0, %s26
      %s30 = sphi 0, %s29
      %s46 = sphi 0, %s30
      %s50 = sphi 0, %s50
      %s52 = sphi 0, %s50
      %s53 = sphi 0, %s52
      %s67 = sphi 0, %s53
      %s71 = sphi 0, %s71
      %s73 = sphi 0, %s71
      %s74 = sphi 0, %s73
      %s88 = sphi 0, %s74
      %s92 = sphi 0, %s92
      %s94 = sphi 0, %s92
      %s95 = sphi 0, %s94
      %s109 = sphi 0, %s95
      %s113 = sphi 0, %s113
      %s115 = sphi 0, %s113
      %s116 = sphi 0, %s115
      %s130 = sphi 0, %s116
      %s136 = sphi 0, %s138
      %s139 = sphi 0, %s136
      %s140 = sphi 0, %s139
      %s156 = sphi 0, %s140
    $region4: #{neural_net_forward.1} parent=1 // loop_header_branch
      %19 = sbr.rel (%p17) target = $region8
    $region5: #{neural_net_forward.1} parent=1 // loop_body
      %s21 = ssub.s32 %s16, 1
      %s22 = ssub.s32 %s16, 2
      %s23 = sadd.s32 %s16, 1
      %s24 = ssub.s32 %s16, %s23
      %p25 = scmp.eq.s32.totalorder %s24, 0
      %s27 = sadd.s32 %s26, 1
      %s28 = scalar_select %p25, %s26, %s27
      %p31 = pneg %p25
      %p32 = scmp.eq.s32.totalorder %s16, 1
      %p33 = por %p31, %p32
      %p34 = scmp.ne.s32.totalorder %s26, %s29
      %p35 = scmp.eq.s32.totalorder %s16, 0
      %p36 = por %p34, %p35
      %p37 = scmp.ne.s32.totalorder %s26, %s29
      %p38 = scmp.eq.s32.totalorder %s21, 1
      %p39 = por %p37, %p38
      %p40 = scmp.ne.s32.totalorder %s29, %s30
      %p41 = scmp.eq.s32.totalorder %s21, 0
      %p42 = por %p40, %p41
      %p43 = scmp.ne.s32.totalorder %s29, %s30
      %p44 = scmp.eq.s32.totalorder %s22, 1
      %p45 = por %p43, %p44
      %p47 = scmp.ne.s32.totalorder %s30, %s46
      %p48 = scmp.eq.s32.totalorder %s22, 0
      %p49 = por %p47, %p48
      %s51 = sadd.s32 %s50, 1
      %p54 = scmp.eq.s32.totalorder %s16, 1
      %p55 = scmp.ne.s32.totalorder %s50, %s52
      %p56 = scmp.eq.s32.totalorder %s16, 0
      %p57 = por %p55, %p56
      %p58 = scmp.ne.s32.totalorder %s50, %s52
      %p59 = scmp.eq.s32.totalorder %s21, 1
      %p60 = por %p58, %p59
      %p61 = scmp.ne.s32.totalorder %s52, %s53
      %p62 = scmp.eq.s32.totalorder %s21, 0
      %p63 = por %p61, %p62
      %p64 = scmp.ne.s32.totalorder %s52, %s53
      %p65 = scmp.eq.s32.totalorder %s22, 1
      %p66 = por %p64, %p65
      %p68 = scmp.ne.s32.totalorder %s53, %s67
      %p69 = scmp.eq.s32.totalorder %s22, 0
      %p70 = por %p68, %p69
      %s72 = sadd.s32 %s71, 1
      %p75 = scmp.eq.s32.totalorder %s16, 1
      %p76 = scmp.ne.s32.totalorder %s71, %s73
      %p77 = scmp.eq.s32.totalorder %s16, 0
      %p78 = por %p76, %p77
      %p79 = scmp.ne.s32.totalorder %s71, %s73
      %p80 = scmp.eq.s32.totalorder %s21, 1
      %p81 = por %p79, %p80
      %p82 = scmp.ne.s32.totalorder %s73, %s74
      %p83 = scmp.eq.s32.totalorder %s21, 0
      %p84 = por %p82, %p83
      %p85 = scmp.ne.s32.totalorder %s73, %s74
      %p86 = scmp.eq.s32.totalorder %s22, 1
      %p87 = por %p85, %p86
      %p89 = scmp.ne.s32.totalorder %s74, %s88
      %p90 = scmp.eq.s32.totalorder %s22, 0
      %p91 = por %p89, %p90
      %s93 = sadd.s32 %s92, 1
      %p96 = scmp.eq.s32.totalorder %s16, 1
      %p97 = scmp.ne.s32.totalorder %s92, %s94
      %p98 = scmp.eq.s32.totalorder %s16, 0
      %p99 = por %p97, %p98
      %p100 = scmp.ne.s32.totalorder %s92, %s94
      %p101 = scmp.eq.s32.totalorder %s21, 1
      %p102 = por %p100, %p101
      %p103 = scmp.ne.s32.totalorder %s94, %s95
      %p104 = scmp.eq.s32.totalorder %s21, 0
      %p105 = por %p103, %p104
      %p106 = scmp.ne.s32.totalorder %s94, %s95
      %p107 = scmp.eq.s32.totalorder %s22, 1
      %p108 = por %p106, %p107
      %p110 = scmp.ne.s32.totalorder %s95, %s109
      %p111 = scmp.eq.s32.totalorder %s22, 0
      %p112 = por %p110, %p111
      %s114 = sadd.s32 %s113, 1
      %p117 = scmp.eq.s32.totalorder %s16, 1
      %p118 = scmp.ne.s32.totalorder %s113, %s115
      %p119 = scmp.eq.s32.totalorder %s16, 0
      %p120 = por %p118, %p119
      %p121 = scmp.ne.s32.totalorder %s113, %s115
      %p122 = scmp.eq.s32.totalorder %s21, 1
      %p123 = por %p121, %p122
      %p124 = scmp.ne.s32.totalorder %s115, %s116
      %p125 = scmp.eq.s32.totalorder %s21, 0
      %p126 = por %p124, %p125
      %p127 = scmp.ne.s32.totalorder %s115, %s116
      %p128 = scmp.eq.s32.totalorder %s22, 1
      %p129 = por %p127, %p128
      %p131 = scmp.ne.s32.totalorder %s116, %s130
      %p132 = scmp.eq.s32.totalorder %s22, 0
      %p133 = por %p131, %p132
      %s134 = ssub.s32 %s16, %s23
      %p135 = scmp.eq.s32.totalorder %s134, 0
      %s137 = sadd.s32 %s136, 1
      %s138 = scalar_select %p135, %s136, %s137
      %p141 = pneg %p135
      %p142 = scmp.eq.s32.totalorder %s16, 1
      %p143 = por %p141, %p142
      %p144 = scmp.ne.s32.totalorder %s136, %s139
      %p145 = scmp.eq.s32.totalorder %s16, 0
      %p146 = por %p144, %p145
      %p147 = scmp.ne.s32.totalorder %s136, %s139
      %p148 = scmp.eq.s32.totalorder %s21, 1
      %p149 = por %p147, %p148
      %p150 = scmp.ne.s32.totalorder %s139, %s140
      %p151 = scmp.eq.s32.totalorder %s21, 0
      %p152 = por %p150, %p151
      %p153 = scmp.ne.s32.totalorder %s139, %s140
      %p154 = scmp.eq.s32.totalorder %s22, 1
      %p155 = por %p153, %p154
      %p157 = scmp.ne.s32.totalorder %s140, %s156
      %p158 = scmp.eq.s32.totalorder %s22, 0
      %p159 = por %p157, %p158
      %p160 = scmp.le.s32.totalorder 1, %s16
      %p161 = scmp.lt.s32.totalorder %s16, 3
      %p162 = pnand %p160, %p161
      %p163 = pneg %p162
      // Predicated region
      $region9: #{neural_net_forward.1} parent=5 // pred_check
        _
      $region10: #{neural_net_forward.1} parent=5 // pred_check_branch
        %165 = sbr.rel (%p162) target = $region12
      $region11: #{neural_net_forward.1} parent=5 // pred_region
        %s166 = ssub.s32 %s16, 1
        // Predicated region
        $region13: #{neural_net_forward.1} parent=11 // pred_check
          %p167 = pneg %p63
        $region14: #{neural_net_forward.1} parent=11 // pred_check_branch
          %169 = sbr.rel (%p167) target = $region16
        $region15: #{neural_net_forward.1} parent=11 // pred_region
          %s171 = ssub.s32 25088, 25088
          %172 = vsyncadd [#allocation3], %s171
          %s173 = sshll.u32 [#allocation2], 4
          %s174 = int_to_ptr.vmem [resolvable:$true] %s173
          %179 = dma.hbm_to_vmem [thread:$0]  %s1, 25088, %s174, [#allocation3], 256, 256, 16
        $region16: #{neural_net_forward.1} parent=11 // pred_fallthru
          _
        // Predicated region
        $region17: #{neural_net_forward.1} parent=11 // pred_check
          %p180 = pneg %p84
        $region18: #{neural_net_forward.1} parent=11 // pred_check_branch
          %182 = sbr.rel (%p180) target = $region20
        $region19: #{neural_net_forward.1} parent=11 // pred_region
          _
        $region20: #{neural_net_forward.1} parent=11 // pred_fallthru
          _
        // Predicated region
        $region21: #{neural_net_forward.1} parent=11 // pred_check
          %p183 = pneg %p105
        $region22: #{neural_net_forward.1} parent=11 // pred_check_branch
          %185 = sbr.rel (%p183) target = $region24
        $region23: #{neural_net_forward.1} parent=11 // pred_region
          %s187 = ssub.s32 4096, 4096
          %188 = vsyncadd [#allocation6], %s187
          %s189 = sshll.u32 [#allocation5], 4
          %s190 = int_to_ptr.vmem [resolvable:$true] %s189
          %195 = dma.hbm_to_vmem [thread:$0]  %s3, 4096, %s190, [#allocation6], 64, 64, 4
        $region24: #{neural_net_forward.1} parent=11 // pred_fallthru
          _
        // Predicated region
        $region25: #{neural_net_forward.1} parent=11 // pred_check
          %p196 = pneg %p126
        $region26: #{neural_net_forward.1} parent=11 // pred_check_branch
          %198 = sbr.rel (%p196) target = $region28
        $region27: #{neural_net_forward.1} parent=11 // pred_region
          _
        $region28: #{neural_net_forward.1} parent=11 // pred_fallthru
          _
      $region12: #{neural_net_forward.1} parent=5 // pred_fallthru
        _
      %p199 = scmp.lt.s32.totalorder %s16, 2
      // Predicated region
      $region29: #{neural_net_forward.1} parent=5 // pred_check
        %p200 = pneg %p199
      $region30: #{neural_net_forward.1} parent=5 // pred_check_branch
        %202 = sbr.rel (%p200) target = $region32
      $region31: #{neural_net_forward.1} parent=5 // pred_region
        // Predicated region
        $region33: #{neural_net_forward.1} parent=31 // pred_check
          %p203 = pneg %p36
        $region34: #{neural_net_forward.1} parent=31 // pred_check_branch
          %205 = sbr.rel (%p203) target = $region36
        $region35: #{neural_net_forward.1} parent=31 // pred_region
          %p206 = scmp.lt.s32.totalorder %s16, 1
          %s207 = scalar_select %p206, %s16, 1
          %s208 = smul.addr %s207, 7
          %s209 = smul.addr %s208, 4
          %s210 = scalar_lea.vmem %s0, %s209
        $region36: #{neural_net_forward.1} parent=31 // pred_fallthru
          _
      $region32: #{neural_net_forward.1} parent=5 // pred_fallthru
        _
      %p211 = scmp.le.s32.totalorder 1, %s16
      %p212 = scmp.lt.s32.totalorder %s16, 3
      %p213 = pnand %p211, %p212
      %p214 = pneg %p213
      // Predicated region
      $region37: #{neural_net_forward.1} parent=5 // pred_check
        _
      $region38: #{neural_net_forward.1} parent=5 // pred_check_branch
        %216 = sbr.rel (%p213) target = $region40
      $region39: #{neural_net_forward.1} parent=5 // pred_region
        %s217 = ssub.s32 %s16, 1
        // Predicated region
        $region41: #{neural_net_forward.1} parent=39 // pred_check
          %p218 = pneg %p63
        $region42: #{neural_net_forward.1} parent=39 // pred_check_branch
          %220 = sbr.rel (%p218) target = $region44
        $region43: #{neural_net_forward.1} parent=39 // pred_region
          %221 = dma.done [#allocation3], 25088
        $region44: #{neural_net_forward.1} parent=39 // pred_fallthru
          _
        // Predicated region
        $region45: #{neural_net_forward.1} parent=39 // pred_check
          %p222 = pneg %p105
        $region46: #{neural_net_forward.1} parent=39 // pred_check_branch
          %224 = sbr.rel (%p222) target = $region48
        $region47: #{neural_net_forward.1} parent=39 // pred_region
          %225 = dma.done [#allocation6], 4096
        $region48: #{neural_net_forward.1} parent=39 // pred_fallthru
          _
        %p226 = scmp.lt.s32.totalorder %s21, 1
        %s227 = scalar_select %p226, %s21, 1
        %s228 = smul.addr %s227, 7
        %s229 = smul.addr %s228, 4
        %s230 = scalar_lea.vmem %s0, %s229
        %p231 = pneg %p42
        %p232 = pneg %p39
        %p233 = pneg %p63
        %p234 = pneg %p60
        %p235 = pneg %p84
        %p236 = pneg %p81
        %p237 = pneg %p105
        %p238 = pneg %p102
        %p239 = pneg %p126
        %p240 = pneg %p123
        %p241 = pneg %p152
        %p242 = pneg %p149
        %s243 = sand.u32 %s139, 1
        %s244 = scalar_lea.sflag [#allocation4], %s243
        %s245 = sand.u32 %s139, 1
        %s246 = smul.addr %s245, 8
        %s247 = scalar_lea.vmem [#allocation7], %s246
        %p248 = scmp.lt.s32.totalorder %s21, 1
        %s249 = scalar_select %p248, %s21, 1
        %s250 = smul.addr %s249, 7
        %s251 = smul.addr %s250, 4
        %s252 = scalar_lea.vmem %s0, %s251
        %v254 = vld [vmem:[%s252] sm:$0xff]
        %v255 = vld [vmem:[%s252 + $0x8] sm:$0xff]
        %v256 = vld [vmem:[%s252 + $0x10] sm:$0xff]
        %v257 = vld [vmem:[%s252 + $0x18] sm:$0xf]
        %v258 = vld [vmem:[#allocation2] sm:$0xff]
        %v259 = vld [vmem:[#allocation2 + $0x8] sm:$0xff]
        %v260 = vld [vmem:[#allocation2 + $0x10] sm:$0xff]
        %v261 = vld [vmem:[#allocation2 + $0x18] sm:$0xff]
        %v262 = vld [vmem:[#allocation2 + $0x20] sm:$0xff]
        %v263 = vld [vmem:[#allocation2 + $0x28] sm:$0xff]
        %v264 = vld [vmem:[#allocation2 + $0x30] sm:$0xff]
        %v265 = vld [vmem:[#allocation2 + $0x38] sm:$0xff]
        %v266 = vld [vmem:[#allocation2 + $0x40] sm:$0xff]
        %v267 = vld [vmem:[#allocation2 + $0x48] sm:$0xff]
        %v268 = vld [vmem:[#allocation2 + $0x50] sm:$0xff]
        %v269 = vld [vmem:[#allocation2 + $0x58] sm:$0xff]
        %v270 = vld [vmem:[#allocation2 + $0x60] sm:$0xff]
        %v271 = vld [vmem:[#allocation2 + $0x68] sm:$0xff]
        %v272 = vld [vmem:[#allocation2 + $0x70] sm:$0xff]
        %v273 = vld [vmem:[#allocation2 + $0x78] sm:$0xff]
        %v274 = vld [vmem:[#allocation2 + $0x80] sm:$0xff]
        %v275 = vld [vmem:[#allocation2 + $0x88] sm:$0xff]
        %v276 = vld [vmem:[#allocation2 + $0x90] sm:$0xff]
        %v277 = vld [vmem:[#allocation2 + $0x98] sm:$0xff]
        %v278 = vld [vmem:[#allocation2 + $0xa0] sm:$0xff]
        %v279 = vld [vmem:[#allocation2 + $0xa8] sm:$0xff]
        %v280 = vld [vmem:[#allocation2 + $0xb0] sm:$0xff]
        %v281 = vld [vmem:[#allocation2 + $0xb8] sm:$0xff]
        %v282 = vld [vmem:[#allocation2 + $0xc0] sm:$0xff]
        %v283 = vld [vmem:[#allocation2 + $0xc8] sm:$0xff]
        %v284 = vld [vmem:[#allocation2 + $0xd0] sm:$0xff]
        %v285 = vld [vmem:[#allocation2 + $0xd8] sm:$0xff]
        %v286 = vld [vmem:[#allocation2 + $0xe0] sm:$0xff]
        %v287 = vld [vmem:[#allocation2 + $0xe8] sm:$0xff]
        %v288 = vld [vmem:[#allocation2 + $0xf0] sm:$0xff]
        %v289 = vld [vmem:[#allocation2 + $0xf8] sm:$0xff]
        %v290 = vld [vmem:[#allocation2 + $0x100] sm:$0xff]
        %v291 = vld [vmem:[#allocation2 + $0x108] sm:$0xff]
        %v292 = vld [vmem:[#allocation2 + $0x110] sm:$0xff]
        %v293 = vld [vmem:[#allocation2 + $0x118] sm:$0xff]
        %v294 = vld [vmem:[#allocation2 + $0x120] sm:$0xff]
        %v295 = vld [vmem:[#allocation2 + $0x128] sm:$0xff]
        %v296 = vld [vmem:[#allocation2 + $0x130] sm:$0xff]
        %v297 = vld [vmem:[#allocation2 + $0x138] sm:$0xff]
        %v298 = vld [vmem:[#allocation2 + $0x140] sm:$0xff]
        %v299 = vld [vmem:[#allocation2 + $0x148] sm:$0xff]
        %v300 = vld [vmem:[#allocation2 + $0x150] sm:$0xff]
        %v301 = vld [vmem:[#allocation2 + $0x158] sm:$0xff]
        %v302 = vld [vmem:[#allocation2 + $0x160] sm:$0xff]
        %v303 = vld [vmem:[#allocation2 + $0x168] sm:$0xff]
        %v304 = vld [vmem:[#allocation2 + $0x170] sm:$0xff]
        %v305 = vld [vmem:[#allocation2 + $0x178] sm:$0xff]
        %v306 = vld [vmem:[#allocation2 + $0x180] sm:$0xff]
        %v307 = vld [vmem:[#allocation2 + $0x188] sm:$0xff]
        %v308 = vld [vmem:[#allocation2 + $0x190] sm:$0xff]
        %v309 = vld [vmem:[#allocation2 + $0x198] sm:$0xff]
        %v310 = vld [vmem:[#allocation2 + $0x1a0] sm:$0xff]
        %v311 = vld [vmem:[#allocation2 + $0x1a8] sm:$0xff]
        %v312 = vld [vmem:[#allocation2 + $0x1b0] sm:$0xff]
        %v313 = vld [vmem:[#allocation2 + $0x1b8] sm:$0xff]
        %v314 = vld [vmem:[#allocation2 + $0x1c0] sm:$0xff]
        %v315 = vld [vmem:[#allocation2 + $0x1c8] sm:$0xff]
        %v316 = vld [vmem:[#allocation2 + $0x1d0] sm:$0xff]
        %v317 = vld [vmem:[#allocation2 + $0x1d8] sm:$0xff]
        %v318 = vld [vmem:[#allocation2 + $0x1e0] sm:$0xff]
        %v319 = vld [vmem:[#allocation2 + $0x1e8] sm:$0xff]
        %v320 = vld [vmem:[#allocation2 + $0x1f0] sm:$0xff]
        %v321 = vld [vmem:[#allocation2 + $0x1f8] sm:$0xff]
        %v322 = vld [vmem:[#allocation2 + $0x200] sm:$0xff]
        %v323 = vld [vmem:[#allocation2 + $0x208] sm:$0xff]
        %v324 = vld [vmem:[#allocation2 + $0x210] sm:$0xff]
        %v325 = vld [vmem:[#allocation2 + $0x218] sm:$0xff]
        %v326 = vld [vmem:[#allocation2 + $0x220] sm:$0xff]
        %v327 = vld [vmem:[#allocation2 + $0x228] sm:$0xff]
        %v328 = vld [vmem:[#allocation2 + $0x230] sm:$0xff]
        %v329 = vld [vmem:[#allocation2 + $0x238] sm:$0xff]
        %v330 = vld [vmem:[#allocation2 + $0x240] sm:$0xff]
        %v331 = vld [vmem:[#allocation2 + $0x248] sm:$0xff]
        %v332 = vld [vmem:[#allocation2 + $0x250] sm:$0xff]
        %v333 = vld [vmem:[#allocation2 + $0x258] sm:$0xff]
        %v334 = vld [vmem:[#allocation2 + $0x260] sm:$0xff]
        %v335 = vld [vmem:[#allocation2 + $0x268] sm:$0xff]
        %v336 = vld [vmem:[#allocation2 + $0x270] sm:$0xff]
        %v337 = vld [vmem:[#allocation2 + $0x278] sm:$0xff]
        %v338 = vld [vmem:[#allocation2 + $0x280] sm:$0xff]
        %v339 = vld [vmem:[#allocation2 + $0x288] sm:$0xff]
        %v340 = vld [vmem:[#allocation2 + $0x290] sm:$0xff]
        %v341 = vld [vmem:[#allocation2 + $0x298] sm:$0xff]
        %v342 = vld [vmem:[#allocation2 + $0x2a0] sm:$0xff]
        %v343 = vld [vmem:[#allocation2 + $0x2a8] sm:$0xff]
        %v344 = vld [vmem:[#allocation2 + $0x2b0] sm:$0xff]
        %v345 = vld [vmem:[#allocation2 + $0x2b8] sm:$0xff]
        %v346 = vld [vmem:[#allocation2 + $0x2c0] sm:$0xff]
        %v347 = vld [vmem:[#allocation2 + $0x2c8] sm:$0xff]
        %v348 = vld [vmem:[#allocation2 + $0x2d0] sm:$0xff]
        %v349 = vld [vmem:[#allocation2 + $0x2d8] sm:$0xff]
        %v350 = vld [vmem:[#allocation2 + $0x2e0] sm:$0xff]
        %v351 = vld [vmem:[#allocation2 + $0x2e8] sm:$0xff]
        %v352 = vld [vmem:[#allocation2 + $0x2f0] sm:$0xff]
        %v353 = vld [vmem:[#allocation2 + $0x2f8] sm:$0xff]
        %v354 = vld [vmem:[#allocation2 + $0x300] sm:$0xff]
        %v355 = vld [vmem:[#allocation2 + $0x308] sm:$0xff]
        %v356 = vld [vmem:[#allocation2 + $0x310] sm:$0xff]
        %v357 = vld [vmem:[#allocation2 + $0x318] sm:$0xff]
        %v358 = vld [vmem:[#allocation2 + $0x320] sm:$0xff]
        %v359 = vld [vmem:[#allocation2 + $0x328] sm:$0xff]
        %v360 = vld [vmem:[#allocation2 + $0x330] sm:$0xff]
        %v361 = vld [vmem:[#allocation2 + $0x338] sm:$0xff]
        %v362 = vld [vmem:[#allocation2 + $0x340] sm:$0xff]
        %v363 = vld [vmem:[#allocation2 + $0x348] sm:$0xff]
        %v364 = vld [vmem:[#allocation2 + $0x350] sm:$0xff]
        %v365 = vld [vmem:[#allocation2 + $0x358] sm:$0xff]
        %v366 = vld [vmem:[#allocation2 + $0x360] sm:$0xff]
        %v367 = vld [vmem:[#allocation2 + $0x368] sm:$0xff]
        %v368 = vld [vmem:[#allocation2 + $0x370] sm:$0xff]
        %v369 = vld [vmem:[#allocation2 + $0x378] sm:$0xff]
        %v370 = vld [vmem:[#allocation2 + $0x380] sm:$0xff]
        %v371 = vld [vmem:[#allocation2 + $0x388] sm:$0xff]
        %v372 = vld [vmem:[#allocation2 + $0x390] sm:$0xff]
        %v373 = vld [vmem:[#allocation2 + $0x398] sm:$0xff]
        %v374 = vld [vmem:[#allocation2 + $0x3a0] sm:$0xff]
        %v375 = vld [vmem:[#allocation2 + $0x3a8] sm:$0xff]
        %v376 = vld [vmem:[#allocation2 + $0x3b0] sm:$0xff]
        %v377 = vld [vmem:[#allocation2 + $0x3b8] sm:$0xff]
        %v378 = vld [vmem:[#allocation2 + $0x3c0] sm:$0xff]
        %v379 = vld [vmem:[#allocation2 + $0x3c8] sm:$0xff]
        %v380 = vld [vmem:[#allocation2 + $0x3d0] sm:$0xff]
        %v381 = vld [vmem:[#allocation2 + $0x3d8] sm:$0xff]
        %v382 = vld [vmem:[#allocation2 + $0x3e0] sm:$0xff]
        %v383 = vld [vmem:[#allocation2 + $0x3e8] sm:$0xff]
        %v384 = vld [vmem:[#allocation2 + $0x3f0] sm:$0xff]
        %v385 = vld [vmem:[#allocation2 + $0x3f8] sm:$0xff]
        %v386 = vld [vmem:[#allocation2 + $0x400] sm:$0xff]
        %v387 = vld [vmem:[#allocation2 + $0x408] sm:$0xff]
        %v388 = vld [vmem:[#allocation2 + $0x410] sm:$0xff]
        %v389 = vld [vmem:[#allocation2 + $0x418] sm:$0xff]
        %v390 = vld [vmem:[#allocation2 + $0x420] sm:$0xff]
        %v391 = vld [vmem:[#allocation2 + $0x428] sm:$0xff]
        %v392 = vld [vmem:[#allocation2 + $0x430] sm:$0xff]
        %v393 = vld [vmem:[#allocation2 + $0x438] sm:$0xff]
        %v394 = vld [vmem:[#allocation2 + $0x440] sm:$0xff]
        %v395 = vld [vmem:[#allocation2 + $0x448] sm:$0xff]
        %v396 = vld [vmem:[#allocation2 + $0x450] sm:$0xff]
        %v397 = vld [vmem:[#allocation2 + $0x458] sm:$0xff]
        %v398 = vld [vmem:[#allocation2 + $0x460] sm:$0xff]
        %v399 = vld [vmem:[#allocation2 + $0x468] sm:$0xff]
        %v400 = vld [vmem:[#allocation2 + $0x470] sm:$0xff]
        %v401 = vld [vmem:[#allocation2 + $0x478] sm:$0xff]
        %v402 = vld [vmem:[#allocation2 + $0x480] sm:$0xff]
        %v403 = vld [vmem:[#allocation2 + $0x488] sm:$0xff]
        %v404 = vld [vmem:[#allocation2 + $0x490] sm:$0xff]
        %v405 = vld [vmem:[#allocation2 + $0x498] sm:$0xff]
        %v406 = vld [vmem:[#allocation2 + $0x4a0] sm:$0xff]
        %v407 = vld [vmem:[#allocation2 + $0x4a8] sm:$0xff]
        %v408 = vld [vmem:[#allocation2 + $0x4b0] sm:$0xff]
        %v409 = vld [vmem:[#allocation2 + $0x4b8] sm:$0xff]
        %v410 = vld [vmem:[#allocation2 + $0x4c0] sm:$0xff]
        %v411 = vld [vmem:[#allocation2 + $0x4c8] sm:$0xff]
        %v412 = vld [vmem:[#allocation2 + $0x4d0] sm:$0xff]
        %v413 = vld [vmem:[#allocation2 + $0x4d8] sm:$0xff]
        %v414 = vld [vmem:[#allocation2 + $0x4e0] sm:$0xff]
        %v415 = vld [vmem:[#allocation2 + $0x4e8] sm:$0xff]
        %v416 = vld [vmem:[#allocation2 + $0x4f0] sm:$0xff]
        %v417 = vld [vmem:[#allocation2 + $0x4f8] sm:$0xff]
        %v418 = vld [vmem:[#allocation2 + $0x500] sm:$0xff]
        %v419 = vld [vmem:[#allocation2 + $0x508] sm:$0xff]
        %v420 = vld [vmem:[#allocation2 + $0x510] sm:$0xff]
        %v421 = vld [vmem:[#allocation2 + $0x518] sm:$0xff]
        %v422 = vld [vmem:[#allocation2 + $0x520] sm:$0xff]
        %v423 = vld [vmem:[#allocation2 + $0x528] sm:$0xff]
        %v424 = vld [vmem:[#allocation2 + $0x530] sm:$0xff]
        %v425 = vld [vmem:[#allocation2 + $0x538] sm:$0xff]
        %v426 = vld [vmem:[#allocation2 + $0x540] sm:$0xff]
        %v427 = vld [vmem:[#allocation2 + $0x548] sm:$0xff]
        %v428 = vld [vmem:[#allocation2 + $0x550] sm:$0xff]
        %v429 = vld [vmem:[#allocation2 + $0x558] sm:$0xff]
        %v430 = vld [vmem:[#allocation2 + $0x560] sm:$0xff]
        %v431 = vld [vmem:[#allocation2 + $0x568] sm:$0xff]
        %v432 = vld [vmem:[#allocation2 + $0x570] sm:$0xff]
        %v433 = vld [vmem:[#allocation2 + $0x578] sm:$0xff]
        %v434 = vld [vmem:[#allocation2 + $0x580] sm:$0xff]
        %v435 = vld [vmem:[#allocation2 + $0x588] sm:$0xff]
        %v436 = vld [vmem:[#allocation2 + $0x590] sm:$0xff]
        %v437 = vld [vmem:[#allocation2 + $0x598] sm:$0xff]
        %v438 = vld [vmem:[#allocation2 + $0x5a0] sm:$0xff]
        %v439 = vld [vmem:[#allocation2 + $0x5a8] sm:$0xff]
        %v440 = vld [vmem:[#allocation2 + $0x5b0] sm:$0xff]
        %v441 = vld [vmem:[#allocation2 + $0x5b8] sm:$0xff]
        %v442 = vld [vmem:[#allocation2 + $0x5c0] sm:$0xff]
        %v443 = vld [vmem:[#allocation2 + $0x5c8] sm:$0xff]
        %v444 = vld [vmem:[#allocation2 + $0x5d0] sm:$0xff]
        %v445 = vld [vmem:[#allocation2 + $0x5d8] sm:$0xff]
        %v446 = vld [vmem:[#allocation2 + $0x5e0] sm:$0xff]
        %v447 = vld [vmem:[#allocation2 + $0x5e8] sm:$0xff]
        %v448 = vld [vmem:[#allocation2 + $0x5f0] sm:$0xff]
        %v449 = vld [vmem:[#allocation2 + $0x5f8] sm:$0xff]
        %v450 = vld [vmem:[#allocation2 + $0x600] sm:$0xff]
        %v451 = vld [vmem:[#allocation2 + $0x608] sm:$0xff]
        %v452 = vld [vmem:[#allocation2 + $0x610] sm:$0xff]
        %v453 = vld [vmem:[#allocation2 + $0x618] sm:$0xff]
        %v454 = vld [vmem:[%s2] sm:$0xf]
        %v456 = vlaneseq
        %v457 = vshrl.u32 %v456, 7
        %v458 = vsub.s32 0, %v457
        %v459 = vrot.slane %v454, %v458
        %v460 = vlaneseq
        %v461 = vshrl.u32 %v460, 7
        %v462 = vsub.s32 1, %v461
        %v463 = vrot.slane %v454, %v462
        %v464 = vlaneseq
        %v465 = vshrl.u32 %v464, 7
        %v466 = vsub.s32 2, %v465
        %v467 = vrot.slane %v454, %v466
        %v468 = vlaneseq
        %v469 = vshrl.u32 %v468, 7
        %v470 = vsub.s32 3, %v469
        %v471 = vrot.slane %v454, %v470
        %v480 = vunpack.c.l.b16 %v254
        %v481 = vunpack.c.h.b16 %v254
        %v482 = vunpack.c.l.b16 %v255
        %v483 = vunpack.c.h.b16 %v255
        %v484 = vunpack.c.l.b16 %v256
        %v485 = vunpack.c.h.b16 %v256
        %v486 = vunpack.c.l.b16 %v257
        %v487 = vpack.c.b16 %v480, %v480
        %v488 = vpack.c.b16 %v481, %v481
        %v489 = vpack.c.b16 %v482, %v482
        %v490 = vpack.c.b16 %v483, %v483
        %v491 = vpack.c.b16 %v484, %v484
        %v492 = vpack.c.b16 %v485, %v485
        %v493 = vpack.c.b16 %v486, %v486
        %v696 = vunpack.c.l.b16 %v258
        %v697 = vunpack.c.h.b16 %v258
        %v698 = vunpack.c.l.b16 %v259
        %v699 = vunpack.c.h.b16 %v259
        %v700 = vunpack.c.l.b16 %v260
        %v701 = vunpack.c.h.b16 %v260
        %v702 = vunpack.c.l.b16 %v261
        %v703 = vunpack.c.h.b16 %v261
        %v704 = vunpack.c.l.b16 %v262
        %v705 = vunpack.c.h.b16 %v262
        %v706 = vunpack.c.l.b16 %v263
        %v707 = vunpack.c.h.b16 %v263
        %v708 = vunpack.c.l.b16 %v264
        %v709 = vunpack.c.h.b16 %v264
        %v710 = vunpack.c.l.b16 %v265
        %v711 = vunpack.c.h.b16 %v265
        %v712 = vunpack.c.l.b16 %v266
        %v713 = vunpack.c.h.b16 %v266
        %v714 = vunpack.c.l.b16 %v267
        %v715 = vunpack.c.h.b16 %v267
        %v716 = vunpack.c.l.b16 %v268
        %v717 = vunpack.c.h.b16 %v268
        %v718 = vunpack.c.l.b16 %v269
        %v719 = vunpack.c.h.b16 %v269
        %v720 = vunpack.c.l.b16 %v270
        %v721 = vunpack.c.h.b16 %v270
        %v722 = vunpack.c.l.b16 %v271
        %v723 = vunpack.c.h.b16 %v271
        %v724 = vunpack.c.l.b16 %v272
        %v725 = vunpack.c.h.b16 %v272
        %v726 = vunpack.c.l.b16 %v273
        %v727 = vunpack.c.h.b16 %v273
        %v728 = vunpack.c.l.b16 %v274
        %v729 = vunpack.c.h.b16 %v274
        %v730 = vunpack.c.l.b16 %v275
        %v731 = vunpack.c.h.b16 %v275
        %v732 = vunpack.c.l.b16 %v276
        %v733 = vunpack.c.h.b16 %v276
        %v734 = vunpack.c.l.b16 %v277
        %v735 = vunpack.c.h.b16 %v277
        %v736 = vunpack.c.l.b16 %v278
        %v737 = vunpack.c.h.b16 %v278
        %v738 = vunpack.c.l.b16 %v279
        %v739 = vunpack.c.h.b16 %v279
        %v740 = vunpack.c.l.b16 %v280
        %v741 = vunpack.c.h.b16 %v280
        %v742 = vunpack.c.l.b16 %v281
        %v743 = vunpack.c.h.b16 %v281
        %v744 = vunpack.c.l.b16 %v282
        %v745 = vunpack.c.h.b16 %v282
        %v746 = vunpack.c.l.b16 %v283
        %v747 = vunpack.c.h.b16 %v283
        %v748 = vunpack.c.l.b16 %v284
        %v749 = vunpack.c.h.b16 %v284
        %v750 = vunpack.c.l.b16 %v285
        %v751 = vunpack.c.h.b16 %v285
        %v752 = vunpack.c.l.b16 %v286
        %v753 = vunpack.c.h.b16 %v286
        %v754 = vunpack.c.l.b16 %v287
        %v755 = vunpack.c.h.b16 %v287
        %v756 = vunpack.c.l.b16 %v288
        %v757 = vunpack.c.h.b16 %v288
        %v758 = vunpack.c.l.b16 %v289
        %v759 = vunpack.c.h.b16 %v289
        %v760 = vunpack.c.l.b16 %v290
        %v761 = vunpack.c.h.b16 %v290
        %v762 = vunpack.c.l.b16 %v291
        %v763 = vunpack.c.h.b16 %v291
        %v764 = vunpack.c.l.b16 %v292
        %v765 = vunpack.c.h.b16 %v292
        %v766 = vunpack.c.l.b16 %v293
        %v767 = vunpack.c.h.b16 %v293
        %v768 = vunpack.c.l.b16 %v294
        %v769 = vunpack.c.h.b16 %v294
        %v770 = vunpack.c.l.b16 %v295
        %v771 = vunpack.c.h.b16 %v295
        %v772 = vunpack.c.l.b16 %v296
        %v773 = vunpack.c.h.b16 %v296
        %v774 = vunpack.c.l.b16 %v297
        %v775 = vunpack.c.h.b16 %v297
        %v776 = vunpack.c.l.b16 %v298
        %v777 = vunpack.c.h.b16 %v298
        %v778 = vunpack.c.l.b16 %v299
        %v779 = vunpack.c.h.b16 %v299
        %v780 = vunpack.c.l.b16 %v300
        %v781 = vunpack.c.h.b16 %v300
        %v782 = vunpack.c.l.b16 %v301
        %v783 = vunpack.c.h.b16 %v301
        %v784 = vunpack.c.l.b16 %v302
        %v785 = vunpack.c.h.b16 %v302
        %v786 = vunpack.c.l.b16 %v303
        %v787 = vunpack.c.h.b16 %v303
        %v788 = vunpack.c.l.b16 %v304
        %v789 = vunpack.c.h.b16 %v304
        %v790 = vunpack.c.l.b16 %v305
        %v791 = vunpack.c.h.b16 %v305
        %v792 = vunpack.c.l.b16 %v306
        %v793 = vunpack.c.h.b16 %v306
        %v794 = vunpack.c.l.b16 %v307
        %v795 = vunpack.c.h.b16 %v307
        %v796 = vunpack.c.l.b16 %v308
        %v797 = vunpack.c.h.b16 %v308
        %v798 = vunpack.c.l.b16 %v309
        %v799 = vunpack.c.h.b16 %v309
        %v800 = vunpack.c.l.b16 %v310
        %v801 = vunpack.c.h.b16 %v310
        %v802 = vunpack.c.l.b16 %v311
        %v803 = vunpack.c.h.b16 %v311
        %v804 = vunpack.c.l.b16 %v312
        %v805 = vunpack.c.h.b16 %v312
        %v806 = vunpack.c.l.b16 %v313
        %v807 = vunpack.c.h.b16 %v313
        %v808 = vunpack.c.l.b16 %v314
        %v809 = vunpack.c.h.b16 %v314
        %v810 = vunpack.c.l.b16 %v315
        %v811 = vunpack.c.h.b16 %v315
        %v812 = vunpack.c.l.b16 %v316
        %v813 = vunpack.c.h.b16 %v316
        %v814 = vunpack.c.l.b16 %v317
        %v815 = vunpack.c.h.b16 %v317
        %v816 = vunpack.c.l.b16 %v318
        %v817 = vunpack.c.h.b16 %v318
        %v818 = vunpack.c.l.b16 %v319
        %v819 = vunpack.c.h.b16 %v319
        %v820 = vunpack.c.l.b16 %v320
        %v821 = vunpack.c.h.b16 %v320
        %v822 = vunpack.c.l.b16 %v321
        %v823 = vunpack.c.h.b16 %v321
        %v824 = vunpack.c.l.b16 %v322
        %v825 = vunpack.c.h.b16 %v322
        %v826 = vunpack.c.l.b16 %v323
        %v827 = vunpack.c.h.b16 %v323
        %v828 = vunpack.c.l.b16 %v324
        %v829 = vunpack.c.h.b16 %v324
        %v830 = vunpack.c.l.b16 %v325
        %v831 = vunpack.c.h.b16 %v325
        %v832 = vunpack.c.l.b16 %v326
        %v833 = vunpack.c.h.b16 %v326
        %v834 = vunpack.c.l.b16 %v327
        %v835 = vunpack.c.h.b16 %v327
        %v836 = vunpack.c.l.b16 %v328
        %v837 = vunpack.c.h.b16 %v328
        %v838 = vunpack.c.l.b16 %v329
        %v839 = vunpack.c.h.b16 %v329
        %v840 = vunpack.c.l.b16 %v330
        %v841 = vunpack.c.h.b16 %v330
        %v842 = vunpack.c.l.b16 %v331
        %v843 = vunpack.c.h.b16 %v331
        %v844 = vunpack.c.l.b16 %v332
        %v845 = vunpack.c.h.b16 %v332
        %v846 = vunpack.c.l.b16 %v333
        %v847 = vunpack.c.h.b16 %v333
        %v848 = vunpack.c.l.b16 %v334
        %v849 = vunpack.c.h.b16 %v334
        %v850 = vunpack.c.l.b16 %v335
        %v851 = vunpack.c.h.b16 %v335
        %v852 = vunpack.c.l.b16 %v336
        %v853 = vunpack.c.h.b16 %v336
        %v854 = vunpack.c.l.b16 %v337
        %v855 = vunpack.c.h.b16 %v337
        %v856 = vunpack.c.l.b16 %v338
        %v857 = vunpack.c.h.b16 %v338
        %v858 = vunpack.c.l.b16 %v339
        %v859 = vunpack.c.h.b16 %v339
        %v860 = vunpack.c.l.b16 %v340
        %v861 = vunpack.c.h.b16 %v340
        %v862 = vunpack.c.l.b16 %v341
        %v863 = vunpack.c.h.b16 %v341
        %v864 = vunpack.c.l.b16 %v342
        %v865 = vunpack.c.h.b16 %v342
        %v866 = vunpack.c.l.b16 %v343
        %v867 = vunpack.c.h.b16 %v343
        %v868 = vunpack.c.l.b16 %v344
        %v869 = vunpack.c.h.b16 %v344
        %v870 = vunpack.c.l.b16 %v345
        %v871 = vunpack.c.h.b16 %v345
        %v872 = vunpack.c.l.b16 %v346
        %v873 = vunpack.c.h.b16 %v346
        %v874 = vunpack.c.l.b16 %v347
        %v875 = vunpack.c.h.b16 %v347
        %v876 = vunpack.c.l.b16 %v348
        %v877 = vunpack.c.h.b16 %v348
        %v878 = vunpack.c.l.b16 %v349
        %v879 = vunpack.c.h.b16 %v349
        %v880 = vunpack.c.l.b16 %v350
        %v881 = vunpack.c.h.b16 %v350
        %v882 = vunpack.c.l.b16 %v351
        %v883 = vunpack.c.h.b16 %v351
        %v884 = vunpack.c.l.b16 %v352
        %v885 = vunpack.c.h.b16 %v352
        %v886 = vunpack.c.l.b16 %v353
        %v887 = vunpack.c.h.b16 %v353
        %v888 = vunpack.c.l.b16 %v354
        %v889 = vunpack.c.h.b16 %v354
        %v890 = vunpack.c.l.b16 %v355
        %v891 = vunpack.c.h.b16 %v355
        %v892 = vunpack.c.l.b16 %v356
        %v893 = vunpack.c.h.b16 %v356
        %v894 = vunpack.c.l.b16 %v357
        %v895 = vunpack.c.h.b16 %v357
        %v896 = vunpack.c.l.b16 %v358
        %v897 = vunpack.c.h.b16 %v358
        %v898 = vunpack.c.l.b16 %v359
        %v899 = vunpack.c.h.b16 %v359
        %v900 = vunpack.c.l.b16 %v360
        %v901 = vunpack.c.h.b16 %v360
        %v902 = vunpack.c.l.b16 %v361
        %v903 = vunpack.c.h.b16 %v361
        %v904 = vunpack.c.l.b16 %v362
        %v905 = vunpack.c.h.b16 %v362
        %v906 = vunpack.c.l.b16 %v363
        %v907 = vunpack.c.h.b16 %v363
        %v908 = vunpack.c.l.b16 %v364
        %v909 = vunpack.c.h.b16 %v364
        %v910 = vunpack.c.l.b16 %v365
        %v911 = vunpack.c.h.b16 %v365
        %v912 = vunpack.c.l.b16 %v366
        %v913 = vunpack.c.h.b16 %v366
        %v914 = vunpack.c.l.b16 %v367
        %v915 = vunpack.c.h.b16 %v367
        %v916 = vunpack.c.l.b16 %v368
        %v917 = vunpack.c.h.b16 %v368
        %v918 = vunpack.c.l.b16 %v369
        %v919 = vunpack.c.h.b16 %v369
        %v920 = vunpack.c.l.b16 %v370
        %v921 = vunpack.c.h.b16 %v370
        %v922 = vunpack.c.l.b16 %v371
        %v923 = vunpack.c.h.b16 %v371
        %v924 = vunpack.c.l.b16 %v372
        %v925 = vunpack.c.h.b16 %v372
        %v926 = vunpack.c.l.b16 %v373
        %v927 = vunpack.c.h.b16 %v373
        %v928 = vunpack.c.l.b16 %v374
        %v929 = vunpack.c.h.b16 %v374
        %v930 = vunpack.c.l.b16 %v375
        %v931 = vunpack.c.h.b16 %v375
        %v932 = vunpack.c.l.b16 %v376
        %v933 = vunpack.c.h.b16 %v376
        %v934 = vunpack.c.l.b16 %v377
        %v935 = vunpack.c.h.b16 %v377
        %v936 = vunpack.c.l.b16 %v378
        %v937 = vunpack.c.h.b16 %v378
        %v938 = vunpack.c.l.b16 %v379
        %v939 = vunpack.c.h.b16 %v379
        %v940 = vunpack.c.l.b16 %v380
        %v941 = vunpack.c.h.b16 %v380
        %v942 = vunpack.c.l.b16 %v381
        %v943 = vunpack.c.h.b16 %v381
        %v944 = vunpack.c.l.b16 %v382
        %v945 = vunpack.c.h.b16 %v382
        %v946 = vunpack.c.l.b16 %v383
        %v947 = vunpack.c.h.b16 %v383
        %v948 = vunpack.c.l.b16 %v384
        %v949 = vunpack.c.h.b16 %v384
        %v950 = vunpack.c.l.b16 %v385
        %v951 = vunpack.c.h.b16 %v385
        %v952 = vunpack.c.l.b16 %v386
        %v953 = vunpack.c.h.b16 %v386
        %v954 = vunpack.c.l.b16 %v387
        %v955 = vunpack.c.h.b16 %v387
        %v956 = vunpack.c.l.b16 %v388
        %v957 = vunpack.c.h.b16 %v388
        %v958 = vunpack.c.l.b16 %v389
        %v959 = vunpack.c.h.b16 %v389
        %v960 = vunpack.c.l.b16 %v390
        %v961 = vunpack.c.h.b16 %v390
        %v962 = vunpack.c.l.b16 %v391
        %v963 = vunpack.c.h.b16 %v391
        %v964 = vunpack.c.l.b16 %v392
        %v965 = vunpack.c.h.b16 %v392
        %v966 = vunpack.c.l.b16 %v393
        %v967 = vunpack.c.h.b16 %v393
        %v968 = vunpack.c.l.b16 %v394
        %v969 = vunpack.c.h.b16 %v394
        %v970 = vunpack.c.l.b16 %v395
        %v971 = vunpack.c.h.b16 %v395
        %v972 = vunpack.c.l.b16 %v396
        %v973 = vunpack.c.h.b16 %v396
        %v974 = vunpack.c.l.b16 %v397
        %v975 = vunpack.c.h.b16 %v397
        %v976 = vunpack.c.l.b16 %v398
        %v977 = vunpack.c.h.b16 %v398
        %v978 = vunpack.c.l.b16 %v399
        %v979 = vunpack.c.h.b16 %v399
        %v980 = vunpack.c.l.b16 %v400
        %v981 = vunpack.c.h.b16 %v400
        %v982 = vunpack.c.l.b16 %v401
        %v983 = vunpack.c.h.b16 %v401
        %v984 = vunpack.c.l.b16 %v402
        %v985 = vunpack.c.h.b16 %v402
        %v986 = vunpack.c.l.b16 %v403
        %v987 = vunpack.c.h.b16 %v403
        %v988 = vunpack.c.l.b16 %v404
        %v989 = vunpack.c.h.b16 %v404
        %v990 = vunpack.c.l.b16 %v405
        %v991 = vunpack.c.h.b16 %v405
        %v992 = vunpack.c.l.b16 %v406
        %v993 = vunpack.c.h.b16 %v406
        %v994 = vunpack.c.l.b16 %v407
        %v995 = vunpack.c.h.b16 %v407
        %v996 = vunpack.c.l.b16 %v408
        %v997 = vunpack.c.h.b16 %v408
        %v998 = vunpack.c.l.b16 %v409
        %v999 = vunpack.c.h.b16 %v409
        %v1000 = vunpack.c.l.b16 %v410
        %v1001 = vunpack.c.h.b16 %v410
        %v1002 = vunpack.c.l.b16 %v411
        %v1003 = vunpack.c.h.b16 %v411
        %v1004 = vunpack.c.l.b16 %v412
        %v1005 = vunpack.c.h.b16 %v412
        %v1006 = vunpack.c.l.b16 %v413
        %v1007 = vunpack.c.h.b16 %v413
        %v1008 = vunpack.c.l.b16 %v414
        %v1009 = vunpack.c.h.b16 %v414
        %v1010 = vunpack.c.l.b16 %v415
        %v1011 = vunpack.c.h.b16 %v415
        %v1012 = vunpack.c.l.b16 %v416
        %v1013 = vunpack.c.h.b16 %v416
        %v1014 = vunpack.c.l.b16 %v417
        %v1015 = vunpack.c.h.b16 %v417
        %v1016 = vunpack.c.l.b16 %v418
        %v1017 = vunpack.c.h.b16 %v418
        %v1018 = vunpack.c.l.b16 %v419
        %v1019 = vunpack.c.h.b16 %v419
        %v1020 = vunpack.c.l.b16 %v420
        %v1021 = vunpack.c.h.b16 %v420
        %v1022 = vunpack.c.l.b16 %v421
        %v1023 = vunpack.c.h.b16 %v421
        %v1024 = vunpack.c.l.b16 %v422
        %v1025 = vunpack.c.h.b16 %v422
        %v1026 = vunpack.c.l.b16 %v423
        %v1027 = vunpack.c.h.b16 %v423
        %v1028 = vunpack.c.l.b16 %v424
        %v1029 = vunpack.c.h.b16 %v424
        %v1030 = vunpack.c.l.b16 %v425
        %v1031 = vunpack.c.h.b16 %v425
        %v1032 = vunpack.c.l.b16 %v426
        %v1033 = vunpack.c.h.b16 %v426
        %v1034 = vunpack.c.l.b16 %v427
        %v1035 = vunpack.c.h.b16 %v427
        %v1036 = vunpack.c.l.b16 %v428
        %v1037 = vunpack.c.h.b16 %v428
        %v1038 = vunpack.c.l.b16 %v429
        %v1039 = vunpack.c.h.b16 %v429
        %v1040 = vunpack.c.l.b16 %v430
        %v1041 = vunpack.c.h.b16 %v430
        %v1042 = vunpack.c.l.b16 %v431
        %v1043 = vunpack.c.h.b16 %v431
        %v1044 = vunpack.c.l.b16 %v432
        %v1045 = vunpack.c.h.b16 %v432
        %v1046 = vunpack.c.l.b16 %v433
        %v1047 = vunpack.c.h.b16 %v433
        %v1048 = vunpack.c.l.b16 %v434
        %v1049 = vunpack.c.h.b16 %v434
        %v1050 = vunpack.c.l.b16 %v435
        %v1051 = vunpack.c.h.b16 %v435
        %v1052 = vunpack.c.l.b16 %v436
        %v1053 = vunpack.c.h.b16 %v436
        %v1054 = vunpack.c.l.b16 %v437
        %v1055 = vunpack.c.h.b16 %v437
        %v1056 = vunpack.c.l.b16 %v438
        %v1057 = vunpack.c.h.b16 %v438
        %v1058 = vunpack.c.l.b16 %v439
        %v1059 = vunpack.c.h.b16 %v439
        %v1060 = vunpack.c.l.b16 %v440
        %v1061 = vunpack.c.h.b16 %v440
        %v1062 = vunpack.c.l.b16 %v441
        %v1063 = vunpack.c.h.b16 %v441
        %v1064 = vunpack.c.l.b16 %v442
        %v1065 = vunpack.c.h.b16 %v442
        %v1066 = vunpack.c.l.b16 %v443
        %v1067 = vunpack.c.h.b16 %v443
        %v1068 = vunpack.c.l.b16 %v444
        %v1069 = vunpack.c.h.b16 %v444
        %v1070 = vunpack.c.l.b16 %v445
        %v1071 = vunpack.c.h.b16 %v445
        %v1072 = vunpack.c.l.b16 %v446
        %v1073 = vunpack.c.h.b16 %v446
        %v1074 = vunpack.c.l.b16 %v447
        %v1075 = vunpack.c.h.b16 %v447
        %v1076 = vunpack.c.l.b16 %v448
        %v1077 = vunpack.c.h.b16 %v448
        %v1078 = vunpack.c.l.b16 %v449
        %v1079 = vunpack.c.h.b16 %v449
        %v1080 = vunpack.c.l.b16 %v450
        %v1081 = vunpack.c.h.b16 %v450
        %v1082 = vunpack.c.l.b16 %v451
        %v1083 = vunpack.c.h.b16 %v451
        %v1084 = vunpack.c.l.b16 %v452
        %v1085 = vunpack.c.h.b16 %v452
        %v1086 = vunpack.c.l.b16 %v453
        %v1087 = vunpack.c.h.b16 %v453
        %v1088 = vpack.c.b16 %v700, %v696
        %v1089 = vpack.c.b16 %v701, %v697
        %v1090 = vpack.c.b16 %v702, %v698
        %v1091 = vpack.c.b16 %v703, %v699
        %v1092 = vpack.c.b16 %v708, %v704
        %v1093 = vpack.c.b16 %v709, %v705
        %v1094 = vpack.c.b16 %v710, %v706
        %v1095 = vpack.c.b16 %v711, %v707
        %v1096 = vpack.c.b16 %v716, %v712
        %v1097 = vpack.c.b16 %v717, %v713
        %v1098 = vpack.c.b16 %v718, %v714
        %v1099 = vpack.c.b16 %v719, %v715
        %v1100 = vpack.c.b16 %v724, %v720
        %v1101 = vpack.c.b16 %v725, %v721
        %v1102 = vpack.c.b16 %v726, %v722
        %v1103 = vpack.c.b16 %v727, %v723
        %v1104 = vpack.c.b16 %v732, %v728
        %v1105 = vpack.c.b16 %v733, %v729
        %v1106 = vpack.c.b16 %v734, %v730
        %v1107 = vpack.c.b16 %v735, %v731
        %v1108 = vpack.c.b16 %v740, %v736
        %v1109 = vpack.c.b16 %v741, %v737
        %v1110 = vpack.c.b16 %v742, %v738
        %v1111 = vpack.c.b16 %v743, %v739
        %v1112 = vpack.c.b16 %v748, %v744
        %v1113 = vpack.c.b16 %v749, %v745
        %v1114 = vpack.c.b16 %v750, %v746
        %v1115 = vpack.c.b16 %v751, %v747
        %v1116 = vpack.c.b16 %v756, %v752
        %v1117 = vpack.c.b16 %v757, %v753
        %v1118 = vpack.c.b16 %v758, %v754
        %v1119 = vpack.c.b16 %v759, %v755
        %v1120 = vpack.c.b16 %v764, %v760
        %v1121 = vpack.c.b16 %v765, %v761
        %v1122 = vpack.c.b16 %v766, %v762
        %v1123 = vpack.c.b16 %v767, %v763
        %v1124 = vpack.c.b16 %v772, %v768
        %v1125 = vpack.c.b16 %v773, %v769
        %v1126 = vpack.c.b16 %v774, %v770
        %v1127 = vpack.c.b16 %v775, %v771
        %v1128 = vpack.c.b16 %v780, %v776
        %v1129 = vpack.c.b16 %v781, %v777
        %v1130 = vpack.c.b16 %v782, %v778
        %v1131 = vpack.c.b16 %v783, %v779
        %v1132 = vpack.c.b16 %v788, %v784
        %v1133 = vpack.c.b16 %v789, %v785
        %v1134 = vpack.c.b16 %v790, %v786
        %v1135 = vpack.c.b16 %v791, %v787
        %v1136 = vpack.c.b16 %v796, %v792
        %v1137 = vpack.c.b16 %v797, %v793
        %v1138 = vpack.c.b16 %v798, %v794
        %v1139 = vpack.c.b16 %v799, %v795
        %v1140 = vpack.c.b16 %v804, %v800
        %v1141 = vpack.c.b16 %v805, %v801
        %v1142 = vpack.c.b16 %v806, %v802
        %v1143 = vpack.c.b16 %v807, %v803
        %v1144 = vpack.c.b16 %v812, %v808
        %v1145 = vpack.c.b16 %v813, %v809
        %v1146 = vpack.c.b16 %v814, %v810
        %v1147 = vpack.c.b16 %v815, %v811
        %v1148 = vpack.c.b16 %v820, %v816
        %v1149 = vpack.c.b16 %v821, %v817
        %v1150 = vpack.c.b16 %v822, %v818
        %v1151 = vpack.c.b16 %v823, %v819
        %v1152 = vpack.c.b16 %v828, %v824
        %v1153 = vpack.c.b16 %v829, %v825
        %v1154 = vpack.c.b16 %v830, %v826
        %v1155 = vpack.c.b16 %v831, %v827
        %v1156 = vpack.c.b16 %v836, %v832
        %v1157 = vpack.c.b16 %v837, %v833
        %v1158 = vpack.c.b16 %v838, %v834
        %v1159 = vpack.c.b16 %v839, %v835
        %v1160 = vpack.c.b16 %v844, %v840
        %v1161 = vpack.c.b16 %v845, %v841
        %v1162 = vpack.c.b16 %v846, %v842
        %v1163 = vpack.c.b16 %v847, %v843
        %v1164 = vpack.c.b16 %v852, %v848
        %v1165 = vpack.c.b16 %v853, %v849
        %v1166 = vpack.c.b16 %v854, %v850
        %v1167 = vpack.c.b16 %v855, %v851
        %v1168 = vpack.c.b16 %v860, %v856
        %v1169 = vpack.c.b16 %v861, %v857
        %v1170 = vpack.c.b16 %v862, %v858
        %v1171 = vpack.c.b16 %v863, %v859
        %v1172 = vpack.c.b16 %v868, %v864
        %v1173 = vpack.c.b16 %v869, %v865
        %v1174 = vpack.c.b16 %v870, %v866
        %v1175 = vpack.c.b16 %v871, %v867
        %v1176 = vpack.c.b16 %v876, %v872
        %v1177 = vpack.c.b16 %v877, %v873
        %v1178 = vpack.c.b16 %v878, %v874
        %v1179 = vpack.c.b16 %v879, %v875
        %v1180 = vpack.c.b16 %v884, %v880
        %v1181 = vpack.c.b16 %v885, %v881
        %v1182 = vpack.c.b16 %v886, %v882
        %v1183 = vpack.c.b16 %v887, %v883
        %v1184 = vpack.c.b16 %v892, %v888
        %v1185 = vpack.c.b16 %v893, %v889
        %v1186 = vpack.c.b16 %v894, %v890
        %v1187 = vpack.c.b16 %v895, %v891
        %v1188 = vpack.c.b16 %v900, %v896
        %v1189 = vpack.c.b16 %v901, %v897
        %v1190 = vpack.c.b16 %v902, %v898
        %v1191 = vpack.c.b16 %v903, %v899
        %v1192 = vpack.c.b16 %v908, %v904
        %v1193 = vpack.c.b16 %v909, %v905
        %v1194 = vpack.c.b16 %v910, %v906
        %v1195 = vpack.c.b16 %v911, %v907
        %v1196 = vpack.c.b16 %v916, %v912
        %v1197 = vpack.c.b16 %v917, %v913
        %v1198 = vpack.c.b16 %v918, %v914
        %v1199 = vpack.c.b16 %v919, %v915
        %v1200 = vpack.c.b16 %v924, %v920
        %v1201 = vpack.c.b16 %v925, %v921
        %v1202 = vpack.c.b16 %v926, %v922
        %v1203 = vpack.c.b16 %v927, %v923
        %v1204 = vpack.c.b16 %v932, %v928
        %v1205 = vpack.c.b16 %v933, %v929
        %v1206 = vpack.c.b16 %v934, %v930
        %v1207 = vpack.c.b16 %v935, %v931
        %v1208 = vpack.c.b16 %v940, %v936
        %v1209 = vpack.c.b16 %v941, %v937
        %v1210 = vpack.c.b16 %v942, %v938
        %v1211 = vpack.c.b16 %v943, %v939
        %v1212 = vpack.c.b16 %v948, %v944
        %v1213 = vpack.c.b16 %v949, %v945
        %v1214 = vpack.c.b16 %v950, %v946
        %v1215 = vpack.c.b16 %v951, %v947
        %v1216 = vpack.c.b16 %v956, %v952
        %v1217 = vpack.c.b16 %v957, %v953
        %v1218 = vpack.c.b16 %v958, %v954
        %v1219 = vpack.c.b16 %v959, %v955
        %v1220 = vpack.c.b16 %v964, %v960
        %v1221 = vpack.c.b16 %v965, %v961
        %v1222 = vpack.c.b16 %v966, %v962
        %v1223 = vpack.c.b16 %v967, %v963
        %v1224 = vpack.c.b16 %v972, %v968
        %v1225 = vpack.c.b16 %v973, %v969
        %v1226 = vpack.c.b16 %v974, %v970
        %v1227 = vpack.c.b16 %v975, %v971
        %v1228 = vpack.c.b16 %v980, %v976
        %v1229 = vpack.c.b16 %v981, %v977
        %v1230 = vpack.c.b16 %v982, %v978
        %v1231 = vpack.c.b16 %v983, %v979
        %v1232 = vpack.c.b16 %v988, %v984
        %v1233 = vpack.c.b16 %v989, %v985
        %v1234 = vpack.c.b16 %v990, %v986
        %v1235 = vpack.c.b16 %v991, %v987
        %v1236 = vpack.c.b16 %v996, %v992
        %v1237 = vpack.c.b16 %v997, %v993
        %v1238 = vpack.c.b16 %v998, %v994
        %v1239 = vpack.c.b16 %v999, %v995
        %v1240 = vpack.c.b16 %v1004, %v1000
        %v1241 = vpack.c.b16 %v1005, %v1001
        %v1242 = vpack.c.b16 %v1006, %v1002
        %v1243 = vpack.c.b16 %v1007, %v1003
        %v1244 = vpack.c.b16 %v1012, %v1008
        %v1245 = vpack.c.b16 %v1013, %v1009
        %v1246 = vpack.c.b16 %v1014, %v1010
        %v1247 = vpack.c.b16 %v1015, %v1011
        %v1248 = vpack.c.b16 %v1020, %v1016
        %v1249 = vpack.c.b16 %v1021, %v1017
        %v1250 = vpack.c.b16 %v1022, %v1018
        %v1251 = vpack.c.b16 %v1023, %v1019
        %v1252 = vpack.c.b16 %v1028, %v1024
        %v1253 = vpack.c.b16 %v1029, %v1025
        %v1254 = vpack.c.b16 %v1030, %v1026
        %v1255 = vpack.c.b16 %v1031, %v1027
        %v1256 = vpack.c.b16 %v1036, %v1032
        %v1257 = vpack.c.b16 %v1037, %v1033
        %v1258 = vpack.c.b16 %v1038, %v1034
        %v1259 = vpack.c.b16 %v1039, %v1035
        %v1260 = vpack.c.b16 %v1044, %v1040
        %v1261 = vpack.c.b16 %v1045, %v1041
        %v1262 = vpack.c.b16 %v1046, %v1042
        %v1263 = vpack.c.b16 %v1047, %v1043
        %v1264 = vpack.c.b16 %v1052, %v1048
        %v1265 = vpack.c.b16 %v1053, %v1049
        %v1266 = vpack.c.b16 %v1054, %v1050
        %v1267 = vpack.c.b16 %v1055, %v1051
        %v1268 = vpack.c.b16 %v1060, %v1056
        %v1269 = vpack.c.b16 %v1061, %v1057
        %v1270 = vpack.c.b16 %v1062, %v1058
        %v1271 = vpack.c.b16 %v1063, %v1059
        %v1272 = vpack.c.b16 %v1068, %v1064
        %v1273 = vpack.c.b16 %v1069, %v1065
        %v1274 = vpack.c.b16 %v1070, %v1066
        %v1275 = vpack.c.b16 %v1071, %v1067
        %v1276 = vpack.c.b16 %v1076, %v1072
        %v1277 = vpack.c.b16 %v1077, %v1073
        %v1278 = vpack.c.b16 %v1078, %v1074
        %v1279 = vpack.c.b16 %v1079, %v1075
        %v1280 = vpack.c.b16 %v1084, %v1080
        %v1281 = vpack.c.b16 %v1085, %v1081
        %v1282 = vpack.c.b16 %v1086, %v1082
        %v1283 = vpack.c.b16 %v1087, %v1083
        %vm1480 = vcmask 130048
        %v1482 = vsel %vm1480, %v493, 0
        %1484 = vmatprep.subr.bf16.mxu0 %v1117
        %1485 = vmatpush1.bf16.msra.mxu0 %v1116
        %1486 = vmatprep.subr.bf16.mxu0 %v1113
        %1487 = vmatpush1.bf16.msra.mxu0 %v1112
        %1488 = vmatprep.subr.bf16.mxu0 %v1109
        %1489 = vmatpush1.bf16.msra.mxu0 %v1108
        %1490 = vmatprep.subr.bf16.mxu0 %v1105
        %1491 = vmatpush1.bf16.msra.mxu0 %v1104
        %1492 = vmatprep.subr.bf16.mxu0 %v1101
        %1493 = vmatpush1.bf16.msra.mxu0 %v1100
        %1494 = vmatprep.subr.bf16.mxu0 %v1097
        %1495 = vmatpush1.bf16.msra.mxu0 %v1096
        %1496 = vmatprep.subr.bf16.mxu0 %v1093
        %1497 = vmatpush1.bf16.msra.mxu0 %v1092
        %1498 = vmatprep.subr.bf16.mxu0 %v1089
        %1499 = vmatpush1.bf16.msra.mxu0 %v1088
        %1500 = vmatprep.subr.bf16.mxu0 %v1149
        %1501 = vmatpush2.bf16.msra.mxu0 %v1148
        %1502 = vmatprep.subr.bf16.mxu0 %v1145
        %1503 = vmatpush2.bf16.msra.mxu0 %v1144
        %1504 = vmatprep.subr.bf16.mxu0 %v1141
        %1505 = vmatpush2.bf16.msra.mxu0 %v1140
        %1506 = vmatprep.subr.bf16.mxu0 %v1137
        %1507 = vmatpush2.bf16.msra.mxu0 %v1136
        %1508 = vmatprep.subr.bf16.mxu0 %v1133
        %1509 = vmatpush2.bf16.msra.mxu0 %v1132
        %1510 = vmatprep.subr.bf16.mxu0 %v1129
        %1511 = vmatpush2.bf16.msra.mxu0 %v1128
        %1512 = vmatprep.subr.bf16.mxu0 %v1125
        %1513 = vmatpush2.bf16.msra.mxu0 %v1124
        %1514 = vmatprep.subr.bf16.mxu0 %v1121
        %1515 = vmatpush2.bf16.msra.mxu0 %v1120
        %1516 = vmatprep.mubr.bf16.mxu0 %v488
        %1517 = vmatmul.mubr.bf16.gmra.mxu0 %v487
        %v1518 = vpop.f32.mrf.mxu0
        %v1519 = vadd.f32 %v459, %v1518
        %v1520 = vpop.f32.mrf.mxu0
        %v1521 = vadd.f32 %v463, %v1520
        %v1522 = vpop.f32.mrf.mxu0
        %v1523 = vpop.f32.mrf.mxu0
        %1524 = vdwg.mxu0
        %1525 = vmatprep.subr.bf16.mxu0 %v1181
        %1526 = vmatpush1.bf16.msra.mxu0 %v1180
        %1527 = vmatprep.subr.bf16.mxu0 %v1177
        %1528 = vmatpush1.bf16.msra.mxu0 %v1176
        %1529 = vmatprep.subr.bf16.mxu0 %v1173
        %1530 = vmatpush1.bf16.msra.mxu0 %v1172
        %1531 = vmatprep.subr.bf16.mxu0 %v1169
        %1532 = vmatpush1.bf16.msra.mxu0 %v1168
        %1533 = vmatprep.subr.bf16.mxu0 %v1165
        %1534 = vmatpush1.bf16.msra.mxu0 %v1164
        %1535 = vmatprep.subr.bf16.mxu0 %v1161
        %1536 = vmatpush1.bf16.msra.mxu0 %v1160
        %1537 = vmatprep.subr.bf16.mxu0 %v1157
        %1538 = vmatpush1.bf16.msra.mxu0 %v1156
        %1539 = vmatprep.subr.bf16.mxu0 %v1153
        %1540 = vmatpush1.bf16.msra.mxu0 %v1152
        %1541 = vmatprep.subr.bf16.mxu0 %v1213
        %1542 = vmatpush2.bf16.msra.mxu0 %v1212
        %1543 = vmatprep.subr.bf16.mxu0 %v1209
        %1544 = vmatpush2.bf16.msra.mxu0 %v1208
        %1545 = vmatprep.subr.bf16.mxu0 %v1205
        %1546 = vmatpush2.bf16.msra.mxu0 %v1204
        %1547 = vmatprep.subr.bf16.mxu0 %v1201
        %1548 = vmatpush2.bf16.msra.mxu0 %v1200
        %1549 = vmatprep.subr.bf16.mxu0 %v1197
        %1550 = vmatpush2.bf16.msra.mxu0 %v1196
        %1551 = vmatprep.subr.bf16.mxu0 %v1193
        %1552 = vmatpush2.bf16.msra.mxu0 %v1192
        %1553 = vmatprep.subr.bf16.mxu0 %v1189
        %1554 = vmatpush2.bf16.msra.mxu0 %v1188
        %1555 = vmatprep.subr.bf16.mxu0 %v1185
        %1556 = vmatpush2.bf16.msra.mxu0 %v1184
        %1557 = vmatprep.mubr.bf16.mxu0 %v490
        %1558 = vmatmul.mubr.bf16.gmra.mxu0 %v489
        %v1559 = vpop.f32.mrf.mxu0
        %v1560 = vadd.f32 %v1519, %v1559
        %v1561 = vpop.f32.mrf.mxu0
        %v1562 = vadd.f32 %v1521, %v1561
        %v1563 = vpop.f32.mrf.mxu0
        %v1564 = vpop.f32.mrf.mxu0
        %1565 = vdwg.mxu0
        %1566 = vmatprep.subr.bf16.mxu0 %v1245
        %1567 = vmatpush1.bf16.msra.mxu0 %v1244
        %1568 = vmatprep.subr.bf16.mxu0 %v1241
        %1569 = vmatpush1.bf16.msra.mxu0 %v1240
        %1570 = vmatprep.subr.bf16.mxu0 %v1237
        %1571 = vmatpush1.bf16.msra.mxu0 %v1236
        %1572 = vmatprep.subr.bf16.mxu0 %v1233
        %1573 = vmatpush1.bf16.msra.mxu0 %v1232
        %1574 = vmatprep.subr.bf16.mxu0 %v1229
        %1575 = vmatpush1.bf16.msra.mxu0 %v1228
        %1576 = vmatprep.subr.bf16.mxu0 %v1225
        %1577 = vmatpush1.bf16.msra.mxu0 %v1224
        %1578 = vmatprep.subr.bf16.mxu0 %v1221
        %1579 = vmatpush1.bf16.msra.mxu0 %v1220
        %1580 = vmatprep.subr.bf16.mxu0 %v1217
        %1581 = vmatpush1.bf16.msra.mxu0 %v1216
        %1582 = vmatprep.subr.bf16.mxu0 %v1277
        %1583 = vmatpush2.bf16.msra.mxu0 %v1276
        %1584 = vmatprep.subr.bf16.mxu0 %v1273
        %1585 = vmatpush2.bf16.msra.mxu0 %v1272
        %1586 = vmatprep.subr.bf16.mxu0 %v1269
        %1587 = vmatpush2.bf16.msra.mxu0 %v1268
        %1588 = vmatprep.subr.bf16.mxu0 %v1265
        %1589 = vmatpush2.bf16.msra.mxu0 %v1264
        %1590 = vmatprep.subr.bf16.mxu0 %v1261
        %1591 = vmatpush2.bf16.msra.mxu0 %v1260
        %1592 = vmatprep.subr.bf16.mxu0 %v1257
        %1593 = vmatpush2.bf16.msra.mxu0 %v1256
        %1594 = vmatprep.subr.bf16.mxu0 %v1253
        %1595 = vmatpush2.bf16.msra.mxu0 %v1252
        %1596 = vmatprep.subr.bf16.mxu0 %v1249
        %1597 = vmatpush2.bf16.msra.mxu0 %v1248
        %1598 = vmatprep.mubr.bf16.mxu0 %v492
        %1599 = vmatmul.mubr.bf16.gmra.mxu0 %v491
        %v1600 = vpop.f32.mrf.mxu0
        %v1601 = vadd.f32 %v1560, %v1600
        %v1602 = vpop.f32.mrf.mxu0
        %v1603 = vadd.f32 %v1562, %v1602
        %v1604 = vpop.f32.mrf.mxu0
        %v1605 = vpop.f32.mrf.mxu0
        %1606 = vdwg.mxu0
        %1607 = vmatprep.subr.bf16.mxu0 0
        %1608 = vmatpush1.bf16.msra.mxu0 0
        %1609 = vmatprep.subr.bf16.mxu0 0
        %1610 = vmatpush1.bf16.msra.mxu0 0
        %1611 = vmatprep.subr.bf16.mxu0 0
        %1612 = vmatpush1.bf16.msra.mxu0 0
        %1613 = vmatprep.subr.bf16.mxu0 0
        %1614 = vmatpush1.bf16.msra.mxu0 0
        %1615 = vmatprep.subr.bf16.mxu0 0
        %1616 = vmatpush1.bf16.msra.mxu0 0
        %1617 = vmatprep.subr.bf16.mxu0 0
        %1618 = vmatpush1.bf16.msra.mxu0 0
        %1619 = vmatprep.subr.bf16.mxu0 0
        %1620 = vmatpush1.bf16.msra.mxu0 0
        %1621 = vmatprep.subr.bf16.mxu0 %v1281
        %1622 = vmatpush1.bf16.msra.mxu0 %v1280
        %1623 = vmatprep.subr.bf16.mxu0 0
        %1624 = vmatpush2.bf16.msra.mxu0 0
        %1625 = vmatprep.subr.bf16.mxu0 0
        %1626 = vmatpush2.bf16.msra.mxu0 0
        %1627 = vmatprep.subr.bf16.mxu0 0
        %1628 = vmatpush2.bf16.msra.mxu0 0
        %1629 = vmatprep.subr.bf16.mxu0 0
        %1630 = vmatpush2.bf16.msra.mxu0 0
        %1631 = vmatprep.subr.bf16.mxu0 0
        %1632 = vmatpush2.bf16.msra.mxu0 0
        %1633 = vmatprep.subr.bf16.mxu0 0
        %1634 = vmatpush2.bf16.msra.mxu0 0
        %1635 = vmatprep.subr.bf16.mxu0 0
        %1636 = vmatpush2.bf16.msra.mxu0 0
        %1637 = vmatprep.subr.bf16.mxu0 0
        %1638 = vmatpush2.bf16.msra.mxu0 0
        %1639 = vmatprep.mubr.bf16.mxu0 0
        %1640 = vmatmul.mubr.bf16.gmra.mxu0 %v1482
        %v1641 = vpop.f32.mrf.mxu0
        %v1642 = vadd.f32 %v1601, %v1641
        %v1643 = vpop.f32.mrf.mxu0
        %v1644 = vadd.f32 %v1603, %v1643
        %v1645 = vpop.f32.mrf.mxu0
        %v1646 = vpop.f32.mrf.mxu0
        %1647 = vdwg.mxu0
        %1648 = vmatprep.subr.bf16.mxu0 %v1119
        %1649 = vmatpush1.bf16.msra.mxu0 %v1118
        %1650 = vmatprep.subr.bf16.mxu0 %v1115
        %1651 = vmatpush1.bf16.msra.mxu0 %v1114
        %1652 = vmatprep.subr.bf16.mxu0 %v1111
        %1653 = vmatpush1.bf16.msra.mxu0 %v1110
        %1654 = vmatprep.subr.bf16.mxu0 %v1107
        %1655 = vmatpush1.bf16.msra.mxu0 %v1106
        %1656 = vmatprep.subr.bf16.mxu0 %v1103
        %1657 = vmatpush1.bf16.msra.mxu0 %v1102
        %1658 = vmatprep.subr.bf16.mxu0 %v1099
        %1659 = vmatpush1.bf16.msra.mxu0 %v1098
        %1660 = vmatprep.subr.bf16.mxu0 %v1095
        %1661 = vmatpush1.bf16.msra.mxu0 %v1094
        %1662 = vmatprep.subr.bf16.mxu0 %v1091
        %1663 = vmatpush1.bf16.msra.mxu0 %v1090
        %1664 = vmatprep.subr.bf16.mxu0 %v1151
        %1665 = vmatpush2.bf16.msra.mxu0 %v1150
        %1666 = vmatprep.subr.bf16.mxu0 %v1147
        %1667 = vmatpush2.bf16.msra.mxu0 %v1146
        %1668 = vmatprep.subr.bf16.mxu0 %v1143
        %1669 = vmatpush2.bf16.msra.mxu0 %v1142
        %1670 = vmatprep.subr.bf16.mxu0 %v1139
        %1671 = vmatpush2.bf16.msra.mxu0 %v1138
        %1672 = vmatprep.subr.bf16.mxu0 %v1135
        %1673 = vmatpush2.bf16.msra.mxu0 %v1134
        %1674 = vmatprep.subr.bf16.mxu0 %v1131
        %1675 = vmatpush2.bf16.msra.mxu0 %v1130
        %1676 = vmatprep.subr.bf16.mxu0 %v1127
        %1677 = vmatpush2.bf16.msra.mxu0 %v1126
        %1678 = vmatprep.subr.bf16.mxu0 %v1123
        %1679 = vmatpush2.bf16.msra.mxu0 %v1122
        %1680 = vmatprep.mubr.bf16.mxu0 %v488
        %1681 = vmatmul.mubr.bf16.gmra.mxu0 %v487
        %v1682 = vpop.f32.mrf.mxu0
        %v1683 = vadd.f32 %v467, %v1682
        %v1684 = vpop.f32.mrf.mxu0
        %v1685 = vadd.f32 %v471, %v1684
        %v1686 = vpop.f32.mrf.mxu0
        %v1687 = vpop.f32.mrf.mxu0
        %1688 = vdwg.mxu0
        %1689 = vmatprep.subr.bf16.mxu0 %v1183
        %1690 = vmatpush1.bf16.msra.mxu0 %v1182
        %1691 = vmatprep.subr.bf16.mxu0 %v1179
        %1692 = vmatpush1.bf16.msra.mxu0 %v1178
        %1693 = vmatprep.subr.bf16.mxu0 %v1175
        %1694 = vmatpush1.bf16.msra.mxu0 %v1174
        %1695 = vmatprep.subr.bf16.mxu0 %v1171
        %1696 = vmatpush1.bf16.msra.mxu0 %v1170
        %1697 = vmatprep.subr.bf16.mxu0 %v1167
        %1698 = vmatpush1.bf16.msra.mxu0 %v1166
        %1699 = vmatprep.subr.bf16.mxu0 %v1163
        %1700 = vmatpush1.bf16.msra.mxu0 %v1162
        %1701 = vmatprep.subr.bf16.mxu0 %v1159
        %1702 = vmatpush1.bf16.msra.mxu0 %v1158
        %1703 = vmatprep.subr.bf16.mxu0 %v1155
        %1704 = vmatpush1.bf16.msra.mxu0 %v1154
        %1705 = vmatprep.subr.bf16.mxu0 %v1215
        %1706 = vmatpush2.bf16.msra.mxu0 %v1214
        %1707 = vmatprep.subr.bf16.mxu0 %v1211
        %1708 = vmatpush2.bf16.msra.mxu0 %v1210
        %1709 = vmatprep.subr.bf16.mxu0 %v1207
        %1710 = vmatpush2.bf16.msra.mxu0 %v1206
        %1711 = vmatprep.subr.bf16.mxu0 %v1203
        %1712 = vmatpush2.bf16.msra.mxu0 %v1202
        %1713 = vmatprep.subr.bf16.mxu0 %v1199
        %1714 = vmatpush2.bf16.msra.mxu0 %v1198
        %1715 = vmatprep.subr.bf16.mxu0 %v1195
        %1716 = vmatpush2.bf16.msra.mxu0 %v1194
        %1717 = vmatprep.subr.bf16.mxu0 %v1191
        %1718 = vmatpush2.bf16.msra.mxu0 %v1190
        %1719 = vmatprep.subr.bf16.mxu0 %v1187
        %1720 = vmatpush2.bf16.msra.mxu0 %v1186
        %1721 = vmatprep.mubr.bf16.mxu0 %v490
        %1722 = vmatmul.mubr.bf16.gmra.mxu0 %v489
        %v1723 = vpop.f32.mrf.mxu0
        %v1724 = vadd.f32 %v1683, %v1723
        %v1725 = vpop.f32.mrf.mxu0
        %v1726 = vadd.f32 %v1685, %v1725
        %v1727 = vpop.f32.mrf.mxu0
        %v1728 = vpop.f32.mrf.mxu0
        %1729 = vdwg.mxu0
        %1730 = vmatprep.subr.bf16.mxu0 %v1247
        %1731 = vmatpush1.bf16.msra.mxu0 %v1246
        %1732 = vmatprep.subr.bf16.mxu0 %v1243
        %1733 = vmatpush1.bf16.msra.mxu0 %v1242
        %1734 = vmatprep.subr.bf16.mxu0 %v1239
        %1735 = vmatpush1.bf16.msra.mxu0 %v1238
        %1736 = vmatprep.subr.bf16.mxu0 %v1235
        %1737 = vmatpush1.bf16.msra.mxu0 %v1234
        %1738 = vmatprep.subr.bf16.mxu0 %v1231
        %1739 = vmatpush1.bf16.msra.mxu0 %v1230
        %1740 = vmatprep.subr.bf16.mxu0 %v1227
        %1741 = vmatpush1.bf16.msra.mxu0 %v1226
        %1742 = vmatprep.subr.bf16.mxu0 %v1223
        %1743 = vmatpush1.bf16.msra.mxu0 %v1222
        %1744 = vmatprep.subr.bf16.mxu0 %v1219
        %1745 = vmatpush1.bf16.msra.mxu0 %v1218
        %1746 = vmatprep.subr.bf16.mxu0 %v1279
        %1747 = vmatpush2.bf16.msra.mxu0 %v1278
        %1748 = vmatprep.subr.bf16.mxu0 %v1275
        %1749 = vmatpush2.bf16.msra.mxu0 %v1274
        %1750 = vmatprep.subr.bf16.mxu0 %v1271
        %1751 = vmatpush2.bf16.msra.mxu0 %v1270
        %1752 = vmatprep.subr.bf16.mxu0 %v1267
        %1753 = vmatpush2.bf16.msra.mxu0 %v1266
        %1754 = vmatprep.subr.bf16.mxu0 %v1263
        %1755 = vmatpush2.bf16.msra.mxu0 %v1262
        %1756 = vmatprep.subr.bf16.mxu0 %v1259
        %1757 = vmatpush2.bf16.msra.mxu0 %v1258
        %1758 = vmatprep.subr.bf16.mxu0 %v1255
        %1759 = vmatpush2.bf16.msra.mxu0 %v1254
        %1760 = vmatprep.subr.bf16.mxu0 %v1251
        %1761 = vmatpush2.bf16.msra.mxu0 %v1250
        %1762 = vmatprep.mubr.bf16.mxu0 %v492
        %1763 = vmatmul.mubr.bf16.gmra.mxu0 %v491
        %v1764 = vpop.f32.mrf.mxu0
        %v1765 = vadd.f32 %v1724, %v1764
        %v1766 = vpop.f32.mrf.mxu0
        %v1767 = vadd.f32 %v1726, %v1766
        %v1768 = vpop.f32.mrf.mxu0
        %v1769 = vpop.f32.mrf.mxu0
        %1770 = vdwg.mxu0
        %1771 = vmatprep.subr.bf16.mxu0 0
        %1772 = vmatpush1.bf16.msra.mxu0 0
        %1773 = vmatprep.subr.bf16.mxu0 0
        %1774 = vmatpush1.bf16.msra.mxu0 0
        %1775 = vmatprep.subr.bf16.mxu0 0
        %1776 = vmatpush1.bf16.msra.mxu0 0
        %1777 = vmatprep.subr.bf16.mxu0 0
        %1778 = vmatpush1.bf16.msra.mxu0 0
        %1779 = vmatprep.subr.bf16.mxu0 0
        %1780 = vmatpush1.bf16.msra.mxu0 0
        %1781 = vmatprep.subr.bf16.mxu0 0
        %1782 = vmatpush1.bf16.msra.mxu0 0
        %1783 = vmatprep.subr.bf16.mxu0 0
        %1784 = vmatpush1.bf16.msra.mxu0 0
        %1785 = vmatprep.subr.bf16.mxu0 %v1283
        %1786 = vmatpush1.bf16.msra.mxu0 %v1282
        %1787 = vmatprep.subr.bf16.mxu0 0
        %1788 = vmatpush2.bf16.msra.mxu0 0
        %1789 = vmatprep.subr.bf16.mxu0 0
        %1790 = vmatpush2.bf16.msra.mxu0 0
        %1791 = vmatprep.subr.bf16.mxu0 0
        %1792 = vmatpush2.bf16.msra.mxu0 0
        %1793 = vmatprep.subr.bf16.mxu0 0
        %1794 = vmatpush2.bf16.msra.mxu0 0
        %1795 = vmatprep.subr.bf16.mxu0 0
        %1796 = vmatpush2.bf16.msra.mxu0 0
        %1797 = vmatprep.subr.bf16.mxu0 0
        %1798 = vmatpush2.bf16.msra.mxu0 0
        %1799 = vmatprep.subr.bf16.mxu0 0
        %1800 = vmatpush2.bf16.msra.mxu0 0
        %1801 = vmatprep.subr.bf16.mxu0 0
        %1802 = vmatpush2.bf16.msra.mxu0 0
        %1803 = vmatprep.mubr.bf16.mxu0 0
        %1804 = vmatmul.mubr.bf16.gmra.mxu0 %v1482
        %v1805 = vpop.f32.mrf.mxu0
        %v1806 = vadd.f32 %v1765, %v1805
        %v1807 = vpop.f32.mrf.mxu0
        %v1808 = vadd.f32 %v1767, %v1807
        %v1809 = vpop.f32.mrf.mxu0
        %v1810 = vpop.f32.mrf.mxu0
        %1811 = vdwg.mxu0
        %v1812 = vmax.f32 %v1642, 0.0
        %v1813 = vmax.f32 %v1644, 0.0
        %v1814 = vmax.f32 %v1806, 0.0
        %v1815 = vmax.f32 %v1808, 0.0
        %v1816 = vpack.c.bf16 %v1812, %v1812
        %v1817 = vpack.c.bf16 %v1813, %v1813
        %v1818 = vpack.c.bf16 %v1814, %v1814
        %v1819 = vpack.c.bf16 %v1815, %v1815
        %v1820 = vld [vmem:[#allocation5] sm:$0xf]
        %v1821 = vld [vmem:[#allocation5 + $0x4] sm:$0xf]
        %v1822 = vld [vmem:[#allocation5 + $0x8] sm:$0xf]
        %v1823 = vld [vmem:[#allocation5 + $0xc] sm:$0xf]
        %v1824 = vld [vmem:[#allocation5 + $0x10] sm:$0xf]
        %v1825 = vld [vmem:[#allocation5 + $0x14] sm:$0xf]
        %v1826 = vld [vmem:[#allocation5 + $0x18] sm:$0xf]
        %v1827 = vld [vmem:[#allocation5 + $0x1c] sm:$0xf]
        %v1828 = vld [vmem:[#allocation5 + $0x20] sm:$0xf]
        %v1829 = vld [vmem:[#allocation5 + $0x24] sm:$0xf]
        %v1830 = vld [vmem:[#allocation5 + $0x28] sm:$0xf]
        %v1831 = vld [vmem:[#allocation5 + $0x2c] sm:$0xf]
        %v1832 = vld [vmem:[#allocation5 + $0x30] sm:$0xf]
        %v1833 = vld [vmem:[#allocation5 + $0x34] sm:$0xf]
        %v1834 = vld [vmem:[#allocation5 + $0x38] sm:$0xf]
        %v1835 = vld [vmem:[#allocation5 + $0x3c] sm:$0xf]
        %v1836 = vld [vmem:[#allocation5 + $0x40] sm:$0xf]
        %v1837 = vld [vmem:[#allocation5 + $0x44] sm:$0xf]
        %v1838 = vld [vmem:[#allocation5 + $0x48] sm:$0xf]
        %v1839 = vld [vmem:[#allocation5 + $0x4c] sm:$0xf]
        %v1840 = vld [vmem:[#allocation5 + $0x50] sm:$0xf]
        %v1841 = vld [vmem:[#allocation5 + $0x54] sm:$0xf]
        %v1842 = vld [vmem:[#allocation5 + $0x58] sm:$0xf]
        %v1843 = vld [vmem:[#allocation5 + $0x5c] sm:$0xf]
        %v1844 = vld [vmem:[#allocation5 + $0x60] sm:$0xf]
        %v1845 = vld [vmem:[#allocation5 + $0x64] sm:$0xf]
        %v1846 = vld [vmem:[#allocation5 + $0x68] sm:$0xf]
        %v1847 = vld [vmem:[#allocation5 + $0x6c] sm:$0xf]
        %v1848 = vld [vmem:[#allocation5 + $0x70] sm:$0xf]
        %v1849 = vld [vmem:[#allocation5 + $0x74] sm:$0xf]
        %v1850 = vld [vmem:[#allocation5 + $0x78] sm:$0xf]
        %v1851 = vld [vmem:[#allocation5 + $0x7c] sm:$0xf]
        %v1852 = vld [vmem:[#allocation5 + $0x80] sm:$0xf]
        %v1853 = vld [vmem:[#allocation5 + $0x84] sm:$0xf]
        %v1854 = vld [vmem:[#allocation5 + $0x88] sm:$0xf]
        %v1855 = vld [vmem:[#allocation5 + $0x8c] sm:$0xf]
        %v1856 = vld [vmem:[#allocation5 + $0x90] sm:$0xf]
        %v1857 = vld [vmem:[#allocation5 + $0x94] sm:$0xf]
        %v1858 = vld [vmem:[#allocation5 + $0x98] sm:$0xf]
        %v1859 = vld [vmem:[#allocation5 + $0x9c] sm:$0xf]
        %v1860 = vld [vmem:[#allocation5 + $0xa0] sm:$0xf]
        %v1861 = vld [vmem:[#allocation5 + $0xa4] sm:$0xf]
        %v1862 = vld [vmem:[#allocation5 + $0xa8] sm:$0xf]
        %v1863 = vld [vmem:[#allocation5 + $0xac] sm:$0xf]
        %v1864 = vld [vmem:[#allocation5 + $0xb0] sm:$0xf]
        %v1865 = vld [vmem:[#allocation5 + $0xb4] sm:$0xf]
        %v1866 = vld [vmem:[#allocation5 + $0xb8] sm:$0xf]
        %v1867 = vld [vmem:[#allocation5 + $0xbc] sm:$0xf]
        %v1868 = vld [vmem:[#allocation5 + $0xc0] sm:$0xf]
        %v1869 = vld [vmem:[#allocation5 + $0xc4] sm:$0xf]
        %v1870 = vld [vmem:[#allocation5 + $0xc8] sm:$0xf]
        %v1871 = vld [vmem:[#allocation5 + $0xcc] sm:$0xf]
        %v1872 = vld [vmem:[#allocation5 + $0xd0] sm:$0xf]
        %v1873 = vld [vmem:[#allocation5 + $0xd4] sm:$0xf]
        %v1874 = vld [vmem:[#allocation5 + $0xd8] sm:$0xf]
        %v1875 = vld [vmem:[#allocation5 + $0xdc] sm:$0xf]
        %v1876 = vld [vmem:[#allocation5 + $0xe0] sm:$0xf]
        %v1877 = vld [vmem:[#allocation5 + $0xe4] sm:$0xf]
        %v1878 = vld [vmem:[#allocation5 + $0xe8] sm:$0xf]
        %v1879 = vld [vmem:[#allocation5 + $0xec] sm:$0xf]
        %v1880 = vld [vmem:[#allocation5 + $0xf0] sm:$0xf]
        %v1881 = vld [vmem:[#allocation5 + $0xf4] sm:$0xf]
        %v1882 = vld [vmem:[#allocation5 + $0xf8] sm:$0xf]
        %v1883 = vld [vmem:[#allocation5 + $0xfc] sm:$0xf]
        %v1884 = vld [vmem:[%s4] sm:$0x1]
        %v1886 = vlaneseq
        %v1887 = vshrl.u32 %v1886, 7
        %v1888 = vsub.s32 0, %v1887
        %v1889 = vrot.slane %v1884, %v1888
        %v1955 = vunpack.c.l.b16 %v1820
        %v1956 = vunpack.c.l.b16 %v1821
        %v1957 = vunpack.c.l.b16 %v1822
        %v1958 = vunpack.c.l.b16 %v1823
        %v1959 = vunpack.c.l.b16 %v1824
        %v1960 = vunpack.c.l.b16 %v1825
        %v1961 = vunpack.c.l.b16 %v1826
        %v1962 = vunpack.c.l.b16 %v1827
        %v1963 = vunpack.c.l.b16 %v1828
        %v1964 = vunpack.c.l.b16 %v1829
        %v1965 = vunpack.c.l.b16 %v1830
        %v1966 = vunpack.c.l.b16 %v1831
        %v1967 = vunpack.c.l.b16 %v1832
        %v1968 = vunpack.c.l.b16 %v1833
        %v1969 = vunpack.c.l.b16 %v1834
        %v1970 = vunpack.c.l.b16 %v1835
        %v1971 = vunpack.c.l.b16 %v1836
        %v1972 = vunpack.c.l.b16 %v1837
        %v1973 = vunpack.c.l.b16 %v1838
        %v1974 = vunpack.c.l.b16 %v1839
        %v1975 = vunpack.c.l.b16 %v1840
        %v1976 = vunpack.c.l.b16 %v1841
        %v1977 = vunpack.c.l.b16 %v1842
        %v1978 = vunpack.c.l.b16 %v1843
        %v1979 = vunpack.c.l.b16 %v1844
        %v1980 = vunpack.c.l.b16 %v1845
        %v1981 = vunpack.c.l.b16 %v1846
        %v1982 = vunpack.c.l.b16 %v1847
        %v1983 = vunpack.c.l.b16 %v1848
        %v1984 = vunpack.c.l.b16 %v1849
        %v1985 = vunpack.c.l.b16 %v1850
        %v1986 = vunpack.c.l.b16 %v1851
        %v1987 = vunpack.c.l.b16 %v1852
        %v1988 = vunpack.c.l.b16 %v1853
        %v1989 = vunpack.c.l.b16 %v1854
        %v1990 = vunpack.c.l.b16 %v1855
        %v1991 = vunpack.c.l.b16 %v1856
        %v1992 = vunpack.c.l.b16 %v1857
        %v1993 = vunpack.c.l.b16 %v1858
        %v1994 = vunpack.c.l.b16 %v1859
        %v1995 = vunpack.c.l.b16 %v1860
        %v1996 = vunpack.c.l.b16 %v1861
        %v1997 = vunpack.c.l.b16 %v1862
        %v1998 = vunpack.c.l.b16 %v1863
        %v1999 = vunpack.c.l.b16 %v1864
        %v2000 = vunpack.c.l.b16 %v1865
        %v2001 = vunpack.c.l.b16 %v1866
        %v2002 = vunpack.c.l.b16 %v1867
        %v2003 = vunpack.c.l.b16 %v1868
        %v2004 = vunpack.c.l.b16 %v1869
        %v2005 = vunpack.c.l.b16 %v1870
        %v2006 = vunpack.c.l.b16 %v1871
        %v2007 = vunpack.c.l.b16 %v1872
        %v2008 = vunpack.c.l.b16 %v1873
        %v2009 = vunpack.c.l.b16 %v1874
        %v2010 = vunpack.c.l.b16 %v1875
        %v2011 = vunpack.c.l.b16 %v1876
        %v2012 = vunpack.c.l.b16 %v1877
        %v2013 = vunpack.c.l.b16 %v1878
        %v2014 = vunpack.c.l.b16 %v1879
        %v2015 = vunpack.c.l.b16 %v1880
        %v2016 = vunpack.c.l.b16 %v1881
        %v2017 = vunpack.c.l.b16 %v1882
        %v2018 = vunpack.c.l.b16 %v1883
        %v2019 = vpack.c.b16 %v1956, %v1955
        %v2020 = vpack.c.b16 %v1958, %v1957
        %v2021 = vpack.c.b16 %v1960, %v1959
        %v2022 = vpack.c.b16 %v1962, %v1961
        %v2023 = vpack.c.b16 %v1964, %v1963
        %v2024 = vpack.c.b16 %v1966, %v1965
        %v2025 = vpack.c.b16 %v1968, %v1967
        %v2026 = vpack.c.b16 %v1970, %v1969
        %v2027 = vpack.c.b16 %v1972, %v1971
        %v2028 = vpack.c.b16 %v1974, %v1973
        %v2029 = vpack.c.b16 %v1976, %v1975
        %v2030 = vpack.c.b16 %v1978, %v1977
        %v2031 = vpack.c.b16 %v1980, %v1979
        %v2032 = vpack.c.b16 %v1982, %v1981
        %v2033 = vpack.c.b16 %v1984, %v1983
        %v2034 = vpack.c.b16 %v1986, %v1985
        %v2035 = vpack.c.b16 %v1988, %v1987
        %v2036 = vpack.c.b16 %v1990, %v1989
        %v2037 = vpack.c.b16 %v1992, %v1991
        %v2038 = vpack.c.b16 %v1994, %v1993
        %v2039 = vpack.c.b16 %v1996, %v1995
        %v2040 = vpack.c.b16 %v1998, %v1997
        %v2041 = vpack.c.b16 %v2000, %v1999
        %v2042 = vpack.c.b16 %v2002, %v2001
        %v2043 = vpack.c.b16 %v2004, %v2003
        %v2044 = vpack.c.b16 %v2006, %v2005
        %v2045 = vpack.c.b16 %v2008, %v2007
        %v2046 = vpack.c.b16 %v2010, %v2009
        %v2047 = vpack.c.b16 %v2012, %v2011
        %v2048 = vpack.c.b16 %v2014, %v2013
        %v2049 = vpack.c.b16 %v2016, %v2015
        %v2050 = vpack.c.b16 %v2018, %v2017
        %2083 = vmatprep.subr.bf16.mxu0 0
        %2084 = vmatpush1.bf16.msra.mxu0 %v2026
        %2085 = vmatprep.subr.bf16.mxu0 0
        %2086 = vmatpush1.bf16.msra.mxu0 %v2025
        %2087 = vmatprep.subr.bf16.mxu0 0
        %2088 = vmatpush1.bf16.msra.mxu0 %v2024
        %2089 = vmatprep.subr.bf16.mxu0 0
        %2090 = vmatpush1.bf16.msra.mxu0 %v2023
        %2091 = vmatprep.subr.bf16.mxu0 0
        %2092 = vmatpush1.bf16.msra.mxu0 %v2022
        %2093 = vmatprep.subr.bf16.mxu0 0
        %2094 = vmatpush1.bf16.msra.mxu0 %v2021
        %2095 = vmatprep.subr.bf16.mxu0 0
        %2096 = vmatpush1.bf16.msra.mxu0 %v2020
        %2097 = vmatprep.subr.bf16.mxu0 0
        %2098 = vmatpush1.bf16.msra.mxu0 %v2019
        %2099 = vmatprep.subr.bf16.mxu0 0
        %2100 = vmatpush2.bf16.msra.mxu0 %v2034
        %2101 = vmatprep.subr.bf16.mxu0 0
        %2102 = vmatpush2.bf16.msra.mxu0 %v2033
        %2103 = vmatprep.subr.bf16.mxu0 0
        %2104 = vmatpush2.bf16.msra.mxu0 %v2032
        %2105 = vmatprep.subr.bf16.mxu0 0
        %2106 = vmatpush2.bf16.msra.mxu0 %v2031
        %2107 = vmatprep.subr.bf16.mxu0 0
        %2108 = vmatpush2.bf16.msra.mxu0 %v2030
        %2109 = vmatprep.subr.bf16.mxu0 0
        %2110 = vmatpush2.bf16.msra.mxu0 %v2029
        %2111 = vmatprep.subr.bf16.mxu0 0
        %2112 = vmatpush2.bf16.msra.mxu0 %v2028
        %2113 = vmatprep.subr.bf16.mxu0 0
        %2114 = vmatpush2.bf16.msra.mxu0 %v2027
        %2115 = vmatprep.mubr.bf16.mxu0 %v1817
        %2116 = vmatmul.mubr.bf16.gmra.mxu0 %v1816
        %v2117 = vpop.f32.mrf.mxu0
        %v2118 = vadd.f32 %v1889, %v2117
        %v2119 = vpop.f32.mrf.mxu0
        %v2120 = vpop.f32.mrf.mxu0
        %v2121 = vpop.f32.mrf.mxu0
        %2122 = vdwg.mxu0
        %2123 = vmatprep.subr.bf16.mxu0 0
        %2124 = vmatpush1.bf16.msra.mxu0 %v2042
        %2125 = vmatprep.subr.bf16.mxu0 0
        %2126 = vmatpush1.bf16.msra.mxu0 %v2041
        %2127 = vmatprep.subr.bf16.mxu0 0
        %2128 = vmatpush1.bf16.msra.mxu0 %v2040
        %2129 = vmatprep.subr.bf16.mxu0 0
        %2130 = vmatpush1.bf16.msra.mxu0 %v2039
        %2131 = vmatprep.subr.bf16.mxu0 0
        %2132 = vmatpush1.bf16.msra.mxu0 %v2038
        %2133 = vmatprep.subr.bf16.mxu0 0
        %2134 = vmatpush1.bf16.msra.mxu0 %v2037
        %2135 = vmatprep.subr.bf16.mxu0 0
        %2136 = vmatpush1.bf16.msra.mxu0 %v2036
        %2137 = vmatprep.subr.bf16.mxu0 0
        %2138 = vmatpush1.bf16.msra.mxu0 %v2035
        %2139 = vmatprep.subr.bf16.mxu0 0
        %2140 = vmatpush2.bf16.msra.mxu0 %v2050
        %2141 = vmatprep.subr.bf16.mxu0 0
        %2142 = vmatpush2.bf16.msra.mxu0 %v2049
        %2143 = vmatprep.subr.bf16.mxu0 0
        %2144 = vmatpush2.bf16.msra.mxu0 %v2048
        %2145 = vmatprep.subr.bf16.mxu0 0
        %2146 = vmatpush2.bf16.msra.mxu0 %v2047
        %2147 = vmatprep.subr.bf16.mxu0 0
        %2148 = vmatpush2.bf16.msra.mxu0 %v2046
        %2149 = vmatprep.subr.bf16.mxu0 0
        %2150 = vmatpush2.bf16.msra.mxu0 %v2045
        %2151 = vmatprep.subr.bf16.mxu0 0
        %2152 = vmatpush2.bf16.msra.mxu0 %v2044
        %2153 = vmatprep.subr.bf16.mxu0 0
        %2154 = vmatpush2.bf16.msra.mxu0 %v2043
        %2155 = vmatprep.mubr.bf16.mxu0 %v1819
        %2156 = vmatmul.mubr.bf16.gmra.mxu0 %v1818
        %v2157 = vpop.f32.mrf.mxu0
        %v2158 = vadd.f32 %v2118, %v2157
        %v2159 = vpop.f32.mrf.mxu0
        %v2160 = vpop.f32.mrf.mxu0
        %v2161 = vpop.f32.mrf.mxu0
        %2162 = vdwg.mxu0
        %2163 = vst [vmem:[%s247] sm:$0xff] %v2158
        %s2164 = sand.u32 %s139, 1
        %s2165 = scalar_lea.sflag [#allocation4], %s2164
        %s2166 = sand.u32 %s139, 1
        %s2167 = smul.addr %s2166, 8
        %s2168 = scalar_lea.vmem [#allocation7], %s2167
        // Predicated region
        $region49: #{neural_net_forward.1} parent=39 // pred_check
          %p2169 = pneg %p149
        $region50: #{neural_net_forward.1} parent=39 // pred_check_branch
          %2171 = sbr.rel (%p2169) target = $region52
        $region51: #{neural_net_forward.1} parent=39 // pred_region
          %s2173 = ssub.s32 128, 128
          %2174 = vsyncadd %s2165, %s2173
          %s2175 = smul.addr %s21, 128
          %s2176 = scalar_lea.hbm %s5, %s2175
          %s2178 = sshll.u32 %s2168, 4
          %s2179 = int_to_ptr.vmem [resolvable:$true] %s2178
          %2181 = dma.vmem_to_hbm [thread:$0]  %s2179, 128, %s2176, %s2165
        $region52: #{neural_net_forward.1} parent=39 // pred_fallthru
          _
      $region40: #{neural_net_forward.1} parent=5 // pred_fallthru
        _
      %p2182 = scmp.le.s32.totalorder 2, %s16
      // Predicated region
      $region53: #{neural_net_forward.1} parent=5 // pred_check
        %p2183 = pneg %p2182
      $region54: #{neural_net_forward.1} parent=5 // pred_check_branch
        %2185 = sbr.rel (%p2183) target = $region56
      $region55: #{neural_net_forward.1} parent=5 // pred_region
        %s2186 = ssub.s32 %s16, 2
        // Predicated region
        $region57: #{neural_net_forward.1} parent=55 // pred_check
          %p2187 = pneg %p155
        $region58: #{neural_net_forward.1} parent=55 // pred_check_branch
          %2189 = sbr.rel (%p2187) target = $region60
        $region59: #{neural_net_forward.1} parent=55 // pred_region
          %s2190 = sand.u32 %s140, 1
          %s2191 = scalar_lea.sflag [#allocation4], %s2190
          %s2192 = sand.u32 %s140, 1
          %s2193 = smul.addr %s2192, 8
          %s2194 = scalar_lea.vmem [#allocation7], %s2193
          %2195 = dma.done %s2191, 128
        $region60: #{neural_net_forward.1} parent=55 // pred_fallthru
          _
      $region56: #{neural_net_forward.1} parent=5 // pred_fallthru
        _
    $region6: #{neural_net_forward.1} parent=1 // loop_footer
      %s20 = sadd.s32 1, %s16
    $region7: #{neural_net_forward.1} parent=1 // loop_footer_branch
      %15 = sbr.rel target = $region3
    $region8: #{neural_net_forward.1} parent=1 // loop_exit
      _
    %2196 = vsyncpa [#allocation3], 1
    %s2197 = scalar_lea.sflag [#allocation3], 1
    %2198 = vsyncpa %s2197, 1
    %2199 = vsyncpa [#allocation6], 1
    %2200 = vsyncpa [#allocation4], 1
    %s2201 = scalar_lea.sflag [#allocation4], 1
    %2202 = vsyncpa %s2201, 1

</llo_original>
